<compile_context>
chip_gen: v6e
topology: v6e:2x2x1
jax: 0.10.0
libtpu: 0.0.40
codegen_flags: <defaults>
</compile_context>

<pallas_src>
import math
from functools import partial

import numpy as np
import jax
import jax.numpy as jnp
from jax.experimental import pallas as pl
from jax.experimental.pallas import tpu as pltpu

F32 = jnp.float32
VMEM = pltpu.MemorySpace.VMEM
VMEM_LIMIT = 64 * 1024 * 1024


def _round_up(x, m):
    return ((x + m - 1) // m) * m


# --------------------------------------------------------------------------- #
# Kernel 1: fused point-wise projections + fourier positional embedding
# --------------------------------------------------------------------------- #

def _point_proj_kernel(x_ref, pn_ref,
                       ip_w, ip_b, ip_g, ip_beta,
                       xm_w1, xm_b1, xm_w2, xm_b2,
                       gauss_ref,
                       inst_ref, mask_ref, pe_ref):
    x = x_ref[...]
    # input_proj: Linear -> LayerNorm -> ReLU
    y = jnp.dot(x, ip_w[...], preferred_element_type=F32) + ip_b[...]
    mu = jnp.mean(y, axis=-1, keepdims=True)
    var = jnp.mean((y - mu) ** 2, axis=-1, keepdims=True)
    y = (y - mu) * jax.lax.rsqrt(var + 1e-5) * ip_g[...] + ip_beta[...]
    inst_ref[...] = jnp.maximum(y, 0.0)
    # x_mask: Linear -> ReLU -> Linear
    h = jnp.maximum(jnp.dot(x, xm_w1[...], preferred_element_type=F32) + xm_b1[...], 0.0)
    mask_ref[...] = jnp.dot(h, xm_w2[...], preferred_element_type=F32) + xm_b2[...]
    # PositionEmbeddingCoordsSine (pos_type='fourier'), coords pre-normalized to [0,1]
    proj = (2.0 * math.pi) * jnp.dot(pn_ref[...], gauss_ref[...],
                                     preferred_element_type=F32)
    pe_ref[...] = jnp.concatenate([jnp.sin(proj), jnp.cos(proj)], axis=-1)


def point_projections(x_ext, pos_norm_ext, params, tile_rows=2048):
    N, C = x_ext.shape
    D = params['d_model']
    TN = min(tile_rows, _round_up(N, 8))
    N_pad = _round_up(N, TN)
    if N_pad != N:
        x_ext = jnp.pad(x_ext, ((0, N_pad - N), (0, 0)))
        pos_norm_ext = jnp.pad(pos_norm_ext, ((0, N_pad - N), (0, 0)))

    ip_w, ip_b, ip_g, ip_beta = params['input_proj']
    w1, b1, w2, b2 = params['x_mask']
    r1 = lambda v: v.reshape(1, -1)
    weights = [ip_w, r1(ip_b), r1(ip_g), r1(ip_beta),
               w1, r1(b1), w2, r1(b2), params['gauss']]

    def row(c):
        return pl.BlockSpec((TN, c), lambda i: (i, 0))

    def const(shape):
        return pl.BlockSpec(shape, lambda i: (0,) * len(shape))

    inst, mask, pe = pl.pallas_call(
        _point_proj_kernel,
        grid=(N_pad // TN,),
        out_shape=(jax.ShapeDtypeStruct((N_pad, D), F32),) * 3,
        in_specs=[row(C), row(3)] + [const(w.shape) for w in weights],
        out_specs=(row(D), row(D), row(D)),
        compiler_params=pltpu.CompilerParams(
            dimension_semantics=("parallel",),
            vmem_limit_bytes=VMEM_LIMIT),
    )(x_ext, pos_norm_ext, *weights)
    return inst[:N], mask[:N], pe[:N]


# --------------------------------------------------------------------------- #
# Kernel 2: one fused transformer decoder layer (grid over batch)
# --------------------------------------------------------------------------- #

def _decoder_layer_kernel(nhead, *refs):
    (tgt_ref, qpos_ref, mem_ref, mpos_ref, bias_ref,
     s_wqk, s_bqk, s_wv, s_bv, s_wo, s_bo, s_g, s_b,
     c_wq, c_bq, c_wk, c_bk, c_wv, c_bv, c_wo, c_bo, c_g, c_b,
     f_w1, f_b1, f_w2, f_b2, f_g, f_b,
     dn_g, dn_b,
     newtgt_ref, inter_ref, sa_ref) = refs

    tgt = tgt_ref[0]            # (Q, D)
    qpos = qpos_ref[0]          # (Q, D)
    mem = mem_ref[0]            # (M, D)
    mpos = mpos_ref[0]          # (M, D)
    bias = bias_ref[0]          # (1, M): 0 = valid key, -1e9 = padded key
    D = tgt.shape[-1]
    dh = D // nhead
    scale = 1.0 / math.sqrt(dh)

    def layer_norm(y, g_ref, b_ref):
        mu = jnp.mean(y, axis=-1, keepdims=True)
        var = jnp.mean((y - mu) ** 2, axis=-1, keepdims=True)
        return (y - mu) * jax.lax.rsqrt(var + 1e-5) * g_ref[...] + b_ref[...]

    def split_heads(x):  # (L, D) -> (H, L, dh) via static slices (layout friendly)
        return jnp.stack([x[:, h * dh:(h + 1) * dh] for h in range(nhead)], axis=0)

    def attention(q, k, v, attn_bias):
        qh, kh, vh = split_heads(q), split_heads(k), split_heads(v)
        s = jnp.einsum('hqd,hkd->hqk', qh, kh,
                       preferred_element_type=F32) * scale          # (H, Q, M)
        if attn_bias is not None:
            s = s + attn_bias[None]
        s = s - jnp.max(s, axis=-1, keepdims=True)
        p = jnp.exp(s)
        l = jnp.sum(p, axis=-1, keepdims=True)                       # (H, Q, 1), >= 1
        ctx = jnp.einsum('hqk,hkd->hqd', p, vh, preferred_element_type=F32)
        ctx = ctx * pl.reciprocal(l, approx=True)                    # normalize post-PV (EUP)
        return jnp.concatenate([ctx[h] for h in range(nhead)], axis=-1)

    # ---- self attention (query = key = tgt + qpos, value = tgt), post-norm ----
    q_in = tgt + qpos
    qk = jnp.dot(q_in, s_wqk[...], preferred_element_type=F32) + s_bqk[...]   # fused Q|K
    v_s = jnp.dot(tgt, s_wv[...], preferred_element_type=F32) + s_bv[...]
    sa_ctx = attention(qk[:, :D], qk[:, D:], v_s, None)
    sa_out = jnp.dot(sa_ctx, s_wo[...], preferred_element_type=F32) + s_bo[...]
    sa_ref[0] = sa_out
    tgt = layer_norm(tgt + sa_out, s_g, s_b)

    # ---- cross attention (query = tgt + qpos, key = mem + mpos, value = mem) ----
    # TODO(synk): for very large point clouds, tile the M axis with an inner
    # pipeline + online softmax to respect the 64 MiB VMEM budget on v7x.
    q_c = jnp.dot(tgt + qpos, c_wq[...], preferred_element_type=F32) + c_bq[...]
    k_c = jnp.dot(mem + mpos, c_wk[...], preferred_element_type=F32) + c_bk[...]
    v_c = jnp.dot(mem, c_wv[...], preferred_element_type=F32) + c_bv[...]
    ca_ctx = attention(q_c, k_c, v_c, bias)
    ca_out = jnp.dot(ca_ctx, c_wo[...], preferred_element_type=F32) + c_bo[...]
    tgt = layer_norm(tgt + ca_out, c_g, c_b)

    # ---- FFN ----
    h = jnp.maximum(jnp.dot(tgt, f_w1[...], preferred_element_type=F32) + f_b1[...], 0.0)
    ffn_out = jnp.dot(h, f_w2[...], preferred_element_type=F32) + f_b2[...]
    tgt = layer_norm(tgt + ffn_out, f_g, f_b)

    newtgt_ref[0] = tgt
    inter_ref[0] = layer_norm(tgt, dn_g, dn_b)      # decoder_norm(intermediate)


def decoder_layer(tgt, query_pos, mem_b, mem_pos_b, key_bias, layer_p, dn_g, dn_b, nhead):
    B, Q, D = tgt.shape
    M = mem_b.shape[1]
    sa, ca, ffn = layer_p['self'], layer_p['cross'], layer_p['ffn']

    r1 = lambda v: v.reshape(1, -1)
    s_wqk = jnp.concatenate([sa['wq'], sa['wk']], axis=1)                 # (D, 2D)
    s_bqk = jnp.concatenate([sa['bq'], sa['bk']], axis=0).reshape(1, -1)

    weights = [
        s_wqk, s_bqk, sa['wv'], r1(sa['bv']), sa['wo'], r1(sa['bo']),
        r1(sa['ln_g']), r1(sa['ln_b']),
        ca['wq'], r1(ca['bq']), ca['wk'], r1(ca['bk']), ca['wv'], r1(ca['bv']),
        ca['wo'], r1(ca['bo']), r1(ca['ln_g']), r1(ca['ln_b']),
        ffn['w1'], r1(ffn['b1']), ffn['w2'], r1(ffn['b2']),
        r1(ffn['ln_g']), r1(ffn['ln_b']),
        r1(dn_g), r1(dn_b),
    ]

    def batched(shape):
        nd = len(shape)
        return pl.BlockSpec(shape, lambda b: (b,) + (0,) * (nd - 1))

    def const(shape):
        nd = len(shape)
        return pl.BlockSpec(shape, lambda b: (0,) * nd)

    in_specs = [batched((1, Q, D)), batched((1, Q, D)),
                batched((1, M, D)), batched((1, M, D)), batched((1, 1, M))]
    in_specs += [const(w.shape) for w in weights]

    out_shape = tuple(jax.ShapeDtypeStruct((B, Q, D), F32) for _ in range(3))
    out_specs = tuple(batched((1, Q, D)) for _ in range(3))

    return pl.pallas_call(
        partial(_decoder_layer_kernel, nhead),
        grid=(B,),
        out_shape=out_shape,
        in_specs=in_specs,
        out_specs=out_specs,
        compiler_params=pltpu.CompilerParams(
            dimension_semantics=("parallel",),
            vmem_limit_bytes=VMEM_LIMIT),
    )(tgt, query_pos, mem_b, mem_pos_b, key_bias, *weights)


# --------------------------------------------------------------------------- #
# Kernel 3: prediction heads (all layers, all batches, all queries in one call)
# --------------------------------------------------------------------------- #

def _pred_heads_kernel(x_ref, w1_ref, b1_ref,
                       wc_ref, bc_ref, ws_ref, bs_ref, wb_ref, bb_ref,
                       cls_ref, sco_ref, box_ref):
    x = x_ref[...]
    D = x.shape[-1]
    h = jnp.maximum(jnp.dot(x, w1_ref[...], preferred_element_type=F32) + b1_ref[...], 0.0)
    cls_ref[...] = jnp.dot(h[:, :D], wc_ref[...], preferred_element_type=F32) + bc_ref[...]
    sco_ref[...] = jnp.dot(h[:, D:2 * D], ws_ref[...], preferred_element_type=F32) + bs_ref[...]
    box_ref[...] = jnp.dot(h[:, 2 * D:], wb_ref[...], preferred_element_type=F32) + bb_ref[...]


def prediction_heads(flat, params):
    R, D = flat.shape
    R_pad = _round_up(R, 8)
    if R_pad != R:
        flat = jnp.pad(flat, ((0, R_pad - R), (0, 0)))
    cw1, cb1, cw2, cb2 = params['out_cls']
    sw1, sb1, sw2, sb2 = params['out_score']
    bw1, bb1, bw2, bb2 = params['out_bbox']
    w1 = jnp.concatenate([cw1, sw1, bw1], axis=1)                 # (D, 3D) fused hidden
    b1 = jnp.concatenate([cb1, sb1, bb1], axis=0).reshape(1, -1)
    ncls = cw2.shape[1]
    r1 = lambda v: v.reshape(1, -1)
    args = [flat, w1, b1, cw2, r1(cb2), sw2, r1(sb2), bw2, r1(bb2)]
    cls_o, sco_o, box_o = pl.pallas_call(
        _pred_heads_kernel,
        out_shape=(jax.ShapeDtypeStruct((R_pad, ncls), F32),
                   jax.ShapeDtypeStruct((R_pad, 1), F32),
                   jax.ShapeDtypeStruct((R_pad, 3), F32)),
        in_specs=[pl.BlockSpec(memory_space=VMEM)] * len(args),
        out_specs=tuple(pl.BlockSpec(memory_space=VMEM) for _ in range(3)),
    )(*args)
    return cls_o[:R], sco_o[:R], box_o[:R]


# --------------------------------------------------------------------------- #
# Kernel 4: mask prediction einsum for all layers / batches (lane-dense M)
# --------------------------------------------------------------------------- #

def _mask_pred_kernel(q_ref, mf_ref, o_ref):
    o_ref[0, 0] = jax.lax.dot_general(
        q_ref[0, 0], mf_ref[0],
        (((1,), (1,)), ((), ())), preferred_element_type=F32)


def mask_pred_all(query_all, mask_b):
    L, B, Q, D = query_all.shape
    M = mask_b.shape[1]
    return pl.pallas_call(
        _mask_pred_kernel,
        grid=(L, B),
        out_shape=jax.ShapeDtypeStruct((L, B, Q, M), F32),
        in_specs=[pl.BlockSpec((1, 1, Q, D), lambda l, b: (l, b, 0, 0)),
                  pl.BlockSpec((1, M, D), lambda l, b: (b, 0, 0))],
        out_specs=pl.BlockSpec((1, 1, Q, M), lambda l, b: (l, b, 0, 0)),
        compiler_params=pltpu.CompilerParams(
            dimension_semantics=("parallel", "parallel"),
            vmem_limit_bytes=VMEM_LIMIT),
    )(query_all, mask_b)


# ------------------------------- parameters -------------------------------- #

def init_params(key, *, in_channel=32, d_model=64, nhead=8, hidden_dim=128,
                num_query=16, num_class=18, num_layer=2):
    keys = jax.random.split(key, 128)
    it = iter(keys)

    def lin(din, dout, zero=False):
        if zero:
            return jnp.zeros((din, dout), F32), jnp.zeros((dout,), F32)
        w = 0.02 * jax.random.normal(next(it), (din, dout), F32)
        return w, jnp.zeros((dout,), F32)

    params = {'d_model': d_model, 'num_query': num_query,
              'nhead': nhead, 'num_layer': num_layer}

    w, b = lin(in_channel, d_model)
    params['input_proj'] = (w, b, jnp.ones((d_model,), F32), jnp.zeros((d_model,), F32))

    w1, b1 = lin(in_channel, d_model)
    w2, b2 = lin(d_model, d_model)
    params['x_mask'] = (w1, b1, w2, b2)

    params['refpoint_embed'] = jax.random.normal(next(it), (num_query, 3), F32)
    params['gauss'] = jax.random.normal(next(it), (3, d_model // 2), F32)

    def head(dout, zero_last=False):
        a1, c1 = lin(d_model, d_model)
        a2, c2 = lin(d_model, dout, zero=zero_last)
        return (a1, c1, a2, c2)

    params['out_cls'] = head(num_class + 1)
    params['out_score'] = head(1)
    params['out_bbox'] = head(3, zero_last=True)   # nn.init.constant_(..., 0)

    def attn_params():
        p = {}
        for name in ('q', 'k', 'v', 'o'):
            w_, b_ = lin(d_model, d_model)
            p['w' + name], p['b' + name] = w_, b_
        p['ln_g'] = jnp.ones((d_model,), F32)
        p['ln_b'] = jnp.zeros((d_model,), F32)
        return p

    layers = []
    for _ in range(num_layer):
        f1, g1 = lin(d_model, hidden_dim)
        f2, g2 = lin(hidden_dim, d_model)
        layers.append({'self': attn_params(), 'cross': attn_params(),
                       'ffn': {'w1': f1, 'b1': g1, 'w2': f2, 'b2': g2,
                               'ln_g': jnp.ones((d_model,), F32),
                               'ln_b': jnp.zeros((d_model,), F32)}})
    params['layers'] = layers
    params['decoder_norm'] = (jnp.ones((d_model,), F32), jnp.zeros((d_model,), F32))
    return params


# ------------------------------- forward ----------------------------------- #

def query_decoder_forward(params, x, pos, batch_offsets, epoch=0):
    del epoch
    B = len(batch_offsets) - 1
    D = params['d_model']
    Q = params['num_query']
    nhead = params['nhead']
    num_layer = params['num_layer']

    offsets = [int(o) for o in batch_offsets]
    lengths = [offsets[i + 1] - offsets[i] for i in range(B)]
    N = offsets[-1]
    max_length = max(lengths)
    M_pad = _round_up(max_length, 128)     # lane-dense key / mask axis

    batch_ids = jnp.asarray(
        np.concatenate([np.full(L, i, np.int32) for i, L in enumerate(lengths)]))
    row_ids = jnp.asarray(
        np.concatenate([np.arange(L, dtype=np.int32) for L in lengths]))

    # per-batch coordinate ranges via segment reductions (no per-batch kernels)
    pmin = jax.ops.segment_min(pos, batch_ids, num_segments=B)     # (B, 3)
    pmax = jax.ops.segment_max(pos, batch_ids, num_segments=B)
    rng = jnp.maximum(pmax - pmin, 1e-6)
    pos_norm = (pos - pmin[batch_ids]) / rng[batch_ids]

    ref_points = jax.nn.sigmoid(params['refpoint_embed'])          # (Q, 3) in [0,1]

    # single fused point-wise kernel: input_proj + x_mask + fourier PE.
    # Query reference points are appended so query_pos comes from the same launch.
    x_ext = jnp.concatenate([x, jnp.zeros((Q, x.shape[1]), F32)], axis=0)
    pn_ext = jnp.concatenate([pos_norm, ref_points], axis=0)
    inst_all, mask_all, pe_all = point_projections(x_ext, pn_ext, params)
    inst_feats, mask_feats, key_pe = inst_all[:N], mask_all[:N], pe_all[:N]
    query_pos = jnp.broadcast_to(pe_all[N:N + Q][None], (B, Q, D))

    # batch + pad with one scatter per tensor
    def scatter(vals, width):
        return jnp.zeros((B, M_pad, width), F32).at[batch_ids, row_ids].set(vals)
    inst_b = scatter(inst_feats, D)
    pos_b = scatter(key_pe, D)
    mask_b = scatter(mask_feats, D)
    valid = jnp.zeros((B, M_pad), F32).at[batch_ids, row_ids].set(1.0)
    key_bias = jnp.where(valid > 0.5, 0.0, -1e9).astype(F32).reshape(B, 1, M_pad)

    tgt = jnp.zeros((B, Q, D), F32)
    ref_points_b = jnp.broadcast_to(ref_points[None], (B, Q, 3))
    dn_g, dn_b = params['decoder_norm']

    # TODO(synk): TransformerDecoderLayer / TransformerDecoderCrossLayer sources
    # (rel_query/rel_key/rel_value relative-position biases, per-layer
    # mask-feature and ref-point refinement, attn_mask thresholding) are not
    # provided; a standard post-norm self-attn + cross-attn + FFN layer is used.
    inters = []
    self_attn_out = None
    for lp in params['layers']:
        tgt, inter, sa_out = decoder_layer(tgt, query_pos, inst_b, pos_b, key_bias,
                                           lp, dn_g, dn_b, nhead)
        inters.append(inter)
        self_attn_out = sa_out

    L = num_layer
    inters_all = jnp.stack(inters, axis=0)                         # (L, B, Q, D)

    # TODO(synk): per-layer mask-feature updates are not reproduced; the projected
    # mask features are reused for every layer.
    mask_feats_list = [mask_feats for _ in range(num_layer + 1)]

    # all prediction heads for all layers in one fused kernel
    flat = inters_all.reshape(L * B * Q, D)
    labels_f, scores_f, bbox_f = prediction_heads(flat, params)
    labels = labels_f.reshape(L, B, Q, -1)
    scores = scores_f.reshape(L, B, Q, 1)
    bbox_delta = bbox_f.reshape(L, B, Q, 3)
    bboxes = (ref_points_b[None] * (pmax - pmin)[None, :, None, :]
              + pmin[None, :, None, :] + bbox_delta)

    masks_padded = mask_pred_all(inters_all, mask_b)               # (L, B, Q, M_pad)

    prediction_labels = [labels[l] for l in range(L)]
    prediction_scores = [scores[l] for l in range(L)]
    prediction_bboxes = [bboxes[l] for l in range(L)]
    prediction_masks = [[masks_padded[l, i, :, :lengths[i]] for i in range(B)]
                        for l in range(L)]

    out = {
        'queries': inters[-1],
        'labels': prediction_labels[-1],
        'masks': prediction_masks[-1],
        'scores': prediction_scores[-1],
        'bboxes': prediction_bboxes[-1],
        'aux_outputs': [
            {'labels': a, 'masks': b, 'scores': c, 'bboxes': d}
            for a, b, c, d in zip(prediction_labels[:-1], prediction_masks[:-1],
                                  prediction_scores[:-1], prediction_bboxes[:-1])
        ],
    }
    return out, mask_feats_list, self_attn_out


# --------------------------------- main ------------------------------------ #

if __name__ == "__main__":
    key = jax.random.PRNGKey(0)
    kx, kp, kparam = jax.random.split(key, 3)

    in_channel = 32
    batch_offsets = [0, 24, 56]            # B = 2 scenes, 24 and 32 points
    N = batch_offsets[-1]

    x = jax.random.normal(kx, (N, in_channel), F32)
    pos = jax.random.uniform(kp, (N, 3), F32, minval=-2.0, maxval=2.0)

    params = init_params(kparam, in_channel=in_channel, d_model=64, nhead=8,
                         hidden_dim=128, num_query=16, num_class=18, num_layer=2)

    out, mask_feats_list, self_attn = query_decoder_forward(
        params, x, pos, batch_offsets, epoch=0)
    jax.block_until_ready((out, mask_feats_list, self_attn))
    print("KERNEL_OK")
</pallas_src>

<mosaic_0001>
module attributes {stable_mosaic.version = 11 : i64} {
  func.func @_point_proj_kernel(%arg0: i32, %arg1: memref<72x32xf32, #tpu.memory_space<vmem>>, %arg2: memref<72x3xf32, #tpu.memory_space<vmem>>, %arg3: memref<32x64xf32, #tpu.memory_space<vmem>>, %arg4: memref<1x64xf32, #tpu.memory_space<vmem>>, %arg5: memref<1x64xf32, #tpu.memory_space<vmem>>, %arg6: memref<1x64xf32, #tpu.memory_space<vmem>>, %arg7: memref<32x64xf32, #tpu.memory_space<vmem>>, %arg8: memref<1x64xf32, #tpu.memory_space<vmem>>, %arg9: memref<64x64xf32, #tpu.memory_space<vmem>>, %arg10: memref<1x64xf32, #tpu.memory_space<vmem>>, %arg11: memref<3x32xf32, #tpu.memory_space<vmem>>, %arg12: memref<72x64xf32, #tpu.memory_space<vmem>>, %arg13: memref<72x64xf32, #tpu.memory_space<vmem>>, %arg14: memref<72x64xf32, #tpu.memory_space<vmem>>) attributes {dimension_semantics = [#tpu.dimension_semantics<parallel>], iteration_bounds = array<i64: 1>, scalar_prefetch = 0 : i64, scratch_operands = 0 : i64, tpu.core_type = #tpu.core_type<tc>, window_params = [{transform_indices = @transform_0, window_bounds = array<i64: 72, 32>}, {transform_indices = @transform_1, window_bounds = array<i64: 72, 3>}, {pipeline_mode = #tpu.pipeline_mode<synchronous>, transform_indices = @transform_2, window_bounds = array<i64: 32, 64>}, {pipeline_mode = #tpu.pipeline_mode<synchronous>, transform_indices = @transform_3, window_bounds = array<i64: 1, 64>}, {pipeline_mode = #tpu.pipeline_mode<synchronous>, transform_indices = @transform_4, window_bounds = array<i64: 1, 64>}, {pipeline_mode = #tpu.pipeline_mode<synchronous>, transform_indices = @transform_5, window_bounds = array<i64: 1, 64>}, {pipeline_mode = #tpu.pipeline_mode<synchronous>, transform_indices = @transform_6, window_bounds = array<i64: 32, 64>}, {pipeline_mode = #tpu.pipeline_mode<synchronous>, transform_indices = @transform_7, window_bounds = array<i64: 1, 64>}, {pipeline_mode = #tpu.pipeline_mode<synchronous>, transform_indices = @transform_8, window_bounds = array<i64: 64, 64>}, {pipeline_mode = #tpu.pipeline_mode<synchronous>, transform_indices = @transform_9, window_bounds = array<i64: 1, 64>}, {pipeline_mode = #tpu.pipeline_mode<synchronous>, transform_indices = @transform_10, window_bounds = array<i64: 3, 32>}, {transform_indices = @transform_11, window_bounds = array<i64: 72, 64>}, {transform_indices = @transform_12, window_bounds = array<i64: 72, 64>}, {transform_indices = @transform_13, window_bounds = array<i64: 72, 64>}]} {
    %c0 = arith.constant 0 : index
    %c0_0 = arith.constant 0 : index
    %0 = vector.load %arg1[%c0, %c0_0] : memref<72x32xf32, #tpu.memory_space<vmem>>, vector<72x32xf32>
    %c0_1 = arith.constant 0 : index
    %c0_2 = arith.constant 0 : index
    %1 = vector.load %arg3[%c0_1, %c0_2] : memref<32x64xf32, #tpu.memory_space<vmem>>, vector<32x64xf32>
    %cst = arith.constant dense<0.000000e+00> : vector<72x64xf32>
    %2 = tpu.matmul %0, %1, %cst {dimension_numbers = #tpu.dot_dimension_numbers<[1], [0], [0], [1], [0, 0, 1, 1], [], []>} : vector<72x32xf32>, vector<32x64xf32>, vector<72x64xf32> -> vector<72x64xf32>
    %c0_3 = arith.constant 0 : index
    %c0_4 = arith.constant 0 : index
    %3 = vector.load %arg4[%c0_3, %c0_4] : memref<1x64xf32, #tpu.memory_space<vmem>>, vector<1x64xf32>
    %4 = vector.broadcast %3 : vector<1x64xf32> to vector<72x64xf32>
    %5 = arith.addf %2, %4 : vector<72x64xf32>
    %cst_5 = arith.constant dense<0.000000e+00> : vector<72xf32>
    %6 = vector.multi_reduction <add>, %5, %cst_5 [1] : vector<72x64xf32> to vector<72xf32>
    %7 = vector.shape_cast %6 : vector<72xf32> to vector<72x1xf32>
    %cst_6 = arith.constant 6.400000e+01 : f32
    %8 = vector.broadcast %cst_6 : f32 to vector<72x1xf32>
    %9 = arith.divf %7, %8 : vector<72x1xf32>
    %10 = vector.broadcast %9 : vector<72x1xf32> to vector<72x64xf32>
    %11 = arith.subf %5, %10 : vector<72x64xf32>
    %12 = arith.mulf %11, %11 : vector<72x64xf32>
    %cst_7 = arith.constant dense<0.000000e+00> : vector<72xf32>
    %13 = vector.multi_reduction <add>, %12, %cst_7 [1] : vector<72x64xf32> to vector<72xf32>
    %14 = vector.shape_cast %13 : vector<72xf32> to vector<72x1xf32>
    %cst_8 = arith.constant 6.400000e+01 : f32
    %15 = vector.broadcast %cst_8 : f32 to vector<72x1xf32>
    %16 = arith.divf %14, %15 : vector<72x1xf32>
    %17 = vector.broadcast %9 : vector<72x1xf32> to vector<72x64xf32>
    %18 = arith.subf %5, %17 : vector<72x64xf32>
    %cst_9 = arith.constant 9.99999974E-6 : f32
    %19 = vector.broadcast %cst_9 : f32 to vector<72x1xf32>
    %20 = arith.addf %16, %19 : vector<72x1xf32>
    %21 = math.rsqrt %20 : vector<72x1xf32>
    %22 = vector.broadcast %21 : vector<72x1xf32> to vector<72x64xf32>
    %23 = arith.mulf %18, %22 : vector<72x64xf32>
    %c0_10 = arith.constant 0 : index
    %c0_11 = arith.constant 0 : index
    %24 = vector.load %arg5[%c0_10, %c0_11] : memref<1x64xf32, #tpu.memory_space<vmem>>, vector<1x64xf32>
    %25 = vector.broadcast %24 : vector<1x64xf32> to vector<72x64xf32>
    %26 = arith.mulf %23, %25 : vector<72x64xf32>
    %c0_12 = arith.constant 0 : index
    %c0_13 = arith.constant 0 : index
    %27 = vector.load %arg6[%c0_12, %c0_13] : memref<1x64xf32, #tpu.memory_space<vmem>>, vector<1x64xf32>
    %28 = vector.broadcast %27 : vector<1x64xf32> to vector<72x64xf32>
    %29 = arith.addf %26, %28 : vector<72x64xf32>
    %cst_14 = arith.constant 0.000000e+00 : f32
    %30 = vector.broadcast %cst_14 : f32 to vector<72x64xf32>
    %31 = arith.maximumf %29, %30 : vector<72x64xf32>
    %c0_15 = arith.constant 0 : index
    %c0_16 = arith.constant 0 : index
    %32 = vector.load %arg12[%c0_15, %c0_16] : memref<72x64xf32, #tpu.memory_space<vmem>>, vector<72x64xf32>
    tpu.vector_store %arg12[%c0_15, %c0_16], %31 {strides = array<i32>} : memref<72x64xf32, #tpu.memory_space<vmem>>, vector<72x64xf32>,
    %c0_17 = arith.constant 0 : index
    %c0_18 = arith.constant 0 : index
    %33 = vector.load %arg7[%c0_17, %c0_18] : memref<32x64xf32, #tpu.memory_space<vmem>>, vector<32x64xf32>
    %cst_19 = arith.constant dense<0.000000e+00> : vector<72x64xf32>
    %34 = tpu.matmul %0, %33, %cst_19 {dimension_numbers = #tpu.dot_dimension_numbers<[1], [0], [0], [1], [0, 0, 1, 1], [], []>} : vector<72x32xf32>, vector<32x64xf32>, vector<72x64xf32> -> vector<72x64xf32>
    %c0_20 = arith.constant 0 : index
    %c0_21 = arith.constant 0 : index
    %35 = vector.load %arg8[%c0_20, %c0_21] : memref<1x64xf32, #tpu.memory_space<vmem>>, vector<1x64xf32>
    %36 = vector.broadcast %35 : vector<1x64xf32> to vector<72x64xf32>
    %37 = arith.addf %34, %36 : vector<72x64xf32>
    %cst_22 = arith.constant 0.000000e+00 : f32
    %38 = vector.broadcast %cst_22 : f32 to vector<72x64xf32>
    %39 = arith.maximumf %37, %38 : vector<72x64xf32>
    %c0_23 = arith.constant 0 : index
    %c0_24 = arith.constant 0 : index
    %40 = vector.load %arg9[%c0_23, %c0_24] : memref<64x64xf32, #tpu.memory_space<vmem>>, vector<64x64xf32>
    %cst_25 = arith.constant dense<0.000000e+00> : vector<72x64xf32>
    %41 = tpu.matmul %39, %40, %cst_25 {dimension_numbers = #tpu.dot_dimension_numbers<[1], [0], [0], [1], [0, 0, 1, 1], [], []>} : vector<72x64xf32>, vector<64x64xf32>, vector<72x64xf32> -> vector<72x64xf32>
    %c0_26 = arith.constant 0 : index
    %c0_27 = arith.constant 0 : index
    %42 = vector.load %arg10[%c0_26, %c0_27] : memref<1x64xf32, #tpu.memory_space<vmem>>, vector<1x64xf32>
    %43 = vector.broadcast %42 : vector<1x64xf32> to vector<72x64xf32>
    %44 = arith.addf %41, %43 : vector<72x64xf32>
    %c0_28 = arith.constant 0 : index
    %c0_29 = arith.constant 0 : index
    %45 = vector.load %arg13[%c0_28, %c0_29] : memref<72x64xf32, #tpu.memory_space<vmem>>, vector<72x64xf32>
    tpu.vector_store %arg13[%c0_28, %c0_29], %44 {strides = array<i32>} : memref<72x64xf32, #tpu.memory_space<vmem>>, vector<72x64xf32>,
    %c0_30 = arith.constant 0 : index
    %c0_31 = arith.constant 0 : index
    %46 = vector.load %arg2[%c0_30, %c0_31] : memref<72x3xf32, #tpu.memory_space<vmem>>, vector<72x3xf32>
    %c0_32 = arith.constant 0 : index
    %c0_33 = arith.constant 0 : index
    %47 = vector.load %arg11[%c0_32, %c0_33] : memref<3x32xf32, #tpu.memory_space<vmem>>, vector<3x32xf32>
    %cst_34 = arith.constant dense<0.000000e+00> : vector<72x32xf32>
    %48 = tpu.matmul %46, %47, %cst_34 {dimension_numbers = #tpu.dot_dimension_numbers<[1], [0], [0], [1], [0, 0, 1, 1], [], []>} : vector<72x3xf32>, vector<3x32xf32>, vector<72x32xf32> -> vector<72x32xf32>
    %cst_35 = arith.constant 6.28318548 : f32
    %49 = vector.broadcast %cst_35 : f32 to vector<72x32xf32>
    %50 = arith.mulf %49, %48 : vector<72x32xf32>
    %51 = math.sin %50 : vector<72x32xf32>
    %52 = math.cos %50 : vector<72x32xf32>
    %53 = tpu.concatenate %51, %52 in 1 : vector<72x32xf32>, vector<72x32xf32> -> vector<72x64xf32>
    %c0_36 = arith.constant 0 : index
    %c0_37 = arith.constant 0 : index
    %54 = vector.load %arg14[%c0_36, %c0_37] : memref<72x64xf32, #tpu.memory_space<vmem>>, vector<72x64xf32>
    tpu.vector_store %arg14[%c0_36, %c0_37], %53 {strides = array<i32>} : memref<72x64xf32, #tpu.memory_space<vmem>>, vector<72x64xf32>,
    return
  }
  func.func @transform_0(%arg0: i32) -> (i32, i32) {
    %c0_i32 = arith.constant 0 : i32
    %c0_i32_0 = arith.constant 0 : i32
    return %arg0, %c0_i32 : i32, i32
  }
  func.func @transform_1(%arg0: i32) -> (i32, i32) {
    %c0_i32 = arith.constant 0 : i32
    %c0_i32_0 = arith.constant 0 : i32
    return %arg0, %c0_i32 : i32, i32
  }
  func.func @transform_2(%arg0: i32) -> (i32, i32) {
    %c0_i32 = arith.constant 0 : i32
    %c0_i32_0 = arith.constant 0 : i32
    %c0_i32_1 = arith.constant 0 : i32
    return %c0_i32, %c0_i32_0 : i32, i32
  }
  func.func @transform_3(%arg0: i32) -> (i32, i32) {
    %c0_i32 = arith.constant 0 : i32
    %c0_i32_0 = arith.constant 0 : i32
    %c0_i32_1 = arith.constant 0 : i32
    return %c0_i32, %c0_i32_0 : i32, i32
  }
  func.func @transform_4(%arg0: i32) -> (i32, i32) {
    %c0_i32 = arith.constant 0 : i32
    %c0_i32_0 = arith.constant 0 : i32
    %c0_i32_1 = arith.constant 0 : i32
    return %c0_i32, %c0_i32_0 : i32, i32
  }
  func.func @transform_5(%arg0: i32) -> (i32, i32) {
    %c0_i32 = arith.constant 0 : i32
    %c0_i32_0 = arith.constant 0 : i32
    %c0_i32_1 = arith.constant 0 : i32
    return %c0_i32, %c0_i32_0 : i32, i32
  }
  func.func @transform_6(%arg0: i32) -> (i32, i32) {
    %c0_i32 = arith.constant 0 : i32
    %c0_i32_0 = arith.constant 0 : i32
    %c0_i32_1 = arith.constant 0 : i32
    return %c0_i32, %c0_i32_0 : i32, i32
  }
  func.func @transform_7(%arg0: i32) -> (i32, i32) {
    %c0_i32 = arith.constant 0 : i32
    %c0_i32_0 = arith.constant 0 : i32
    %c0_i32_1 = arith.constant 0 : i32
    return %c0_i32, %c0_i32_0 : i32, i32
  }
  func.func @transform_8(%arg0: i32) -> (i32, i32) {
    %c0_i32 = arith.constant 0 : i32
    %c0_i32_0 = arith.constant 0 : i32
    %c0_i32_1 = arith.constant 0 : i32
    return %c0_i32, %c0_i32_0 : i32, i32
  }
  func.func @transform_9(%arg0: i32) -> (i32, i32) {
    %c0_i32 = arith.constant 0 : i32
    %c0_i32_0 = arith.constant 0 : i32
    %c0_i32_1 = arith.constant 0 : i32
    return %c0_i32, %c0_i32_0 : i32, i32
  }
  func.func @transform_10(%arg0: i32) -> (i32, i32) {
    %c0_i32 = arith.constant 0 : i32
    %c0_i32_0 = arith.constant 0 : i32
    %c0_i32_1 = arith.constant 0 : i32
    return %c0_i32, %c0_i32_0 : i32, i32
  }
  func.func @transform_11(%arg0: i32) -> (i32, i32) {
    %c0_i32 = arith.constant 0 : i32
    %c0_i32_0 = arith.constant 0 : i32
    return %arg0, %c0_i32 : i32, i32
  }
  func.func @transform_12(%arg0: i32) -> (i32, i32) {
    %c0_i32 = arith.constant 0 : i32
    %c0_i32_0 = arith.constant 0 : i32
    return %arg0, %c0_i32 : i32, i32
  }
  func.func @transform_13(%arg0: i32) -> (i32, i32) {
    %c0_i32 = arith.constant 0 : i32
    %c0_i32_0 = arith.constant 0 : i32
    return %arg0, %c0_i32 : i32, i32
  }
}

</mosaic_0001>

<llo_original>
// kernel: tpu_custom_call.1
$region0: #{tpu_custom_call.1}
  #allocation0 [shape = 'u32[]', space=smem, size = 0x4, offset = 0x4, fixed_abs, tag = 'smem constant byte address 0x4 - core index']
  #allocation1 [shape = 'u32[144,128]{1,0:T(1,128)}', space=vmem, size = 0x12000, scoped, tag = 'internal scratch']
  %s0 = inlined_call_operand.vmem [shape: f32[72,32], index: 0, kind: input, shape index: {}]
  %s1 = inlined_call_operand.vmem [shape: f32[72,3], index: 1, kind: input, shape index: {}]
  %s2 = inlined_call_operand.vmem [shape: f32[32,64], index: 2, kind: input, shape index: {}]
  %s3 = inlined_call_operand.vmem [shape: f32[1,64], index: 3, kind: input, shape index: {}]
  %s4 = inlined_call_operand.vmem [shape: f32[1,64], index: 4, kind: input, shape index: {}]
  %s5 = inlined_call_operand.vmem [shape: f32[1,64], index: 5, kind: input, shape index: {}]
  %s6 = inlined_call_operand.vmem [shape: f32[32,64], index: 6, kind: input, shape index: {}]
  %s7 = inlined_call_operand.vmem [shape: f32[1,64], index: 7, kind: input, shape index: {}]
  %s8 = inlined_call_operand.vmem [shape: f32[64,64], index: 8, kind: input, shape index: {}]
  %s9 = inlined_call_operand.vmem [shape: f32[1,64], index: 9, kind: input, shape index: {}]
  %s10 = inlined_call_operand.vmem [shape: f32[3,32], index: 10, kind: input, shape index: {}]
  %s11 = inlined_call_operand.vmem [shape: f32[72,64], index: 11, kind: output, shape index: {0}]
  %s12 = inlined_call_operand.vmem [shape: f32[72,64], index: 12, kind: output, shape index: {1}]
  %s13 = inlined_call_operand.vmem [shape: f32[72,64], index: 13, kind: output, shape index: {2}]
  %14 = xla_tuple %s11, %s12, %s13
  %s15 = sld [smem:[#allocation0]]
  $region70: #{tpu_custom_call.1} parent=0
    _
  %s17 = ssub.s32 1, %s15
  %s18 = scalar_select 0, %s17, %s15
  // Predicated region
  $region2: #{tpu_custom_call.1} parent=0 // pred_check
    _
  $region3: #{tpu_custom_call.1} parent=0 // pred_check_branch
    %20 = sbr.rel (0) target = $region5
  $region4: #{tpu_custom_call.1} parent=0 // pred_region
    _
  $region5: #{tpu_custom_call.1} parent=0 // pred_fallthru
    _
  // Predicated region
  $region6: #{tpu_custom_call.1} parent=0 // pred_check
    _
  $region7: #{tpu_custom_call.1} parent=0 // pred_check_branch
    %22 = sbr.rel (0) target = $region9
  $region8: #{tpu_custom_call.1} parent=0 // pred_region
    _
  $region9: #{tpu_custom_call.1} parent=0 // pred_fallthru
    _
  // Predicated region
  $region10: #{tpu_custom_call.1} parent=0 // pred_check
    _
  $region11: #{tpu_custom_call.1} parent=0 // pred_check_branch
    %24 = sbr.rel (0) target = $region13
  $region12: #{tpu_custom_call.1} parent=0 // pred_region
    _
  $region13: #{tpu_custom_call.1} parent=0 // pred_fallthru
    _
  // Predicated region
  $region14: #{tpu_custom_call.1} parent=0 // pred_check
    _
  $region15: #{tpu_custom_call.1} parent=0 // pred_check_branch
    %26 = sbr.rel (0) target = $region17
  $region16: #{tpu_custom_call.1} parent=0 // pred_region
    _
  $region17: #{tpu_custom_call.1} parent=0 // pred_fallthru
    _
  // Predicated region
  $region18: #{tpu_custom_call.1} parent=0 // pred_check
    _
  $region19: #{tpu_custom_call.1} parent=0 // pred_check_branch
    %28 = sbr.rel (0) target = $region21
  $region20: #{tpu_custom_call.1} parent=0 // pred_region
    _
  $region21: #{tpu_custom_call.1} parent=0 // pred_fallthru
    _
  // Predicated region
  $region22: #{tpu_custom_call.1} parent=0 // pred_check
    _
  $region23: #{tpu_custom_call.1} parent=0 // pred_check_branch
    %30 = sbr.rel (0) target = $region25
  $region24: #{tpu_custom_call.1} parent=0 // pred_region
    _
  $region25: #{tpu_custom_call.1} parent=0 // pred_fallthru
    _
  // Predicated region
  $region26: #{tpu_custom_call.1} parent=0 // pred_check
    _
  $region27: #{tpu_custom_call.1} parent=0 // pred_check_branch
    %32 = sbr.rel (0) target = $region29
  $region28: #{tpu_custom_call.1} parent=0 // pred_region
    _
  $region29: #{tpu_custom_call.1} parent=0 // pred_fallthru
    _
  // Predicated region
  $region30: #{tpu_custom_call.1} parent=0 // pred_check
    _
  $region31: #{tpu_custom_call.1} parent=0 // pred_check_branch
    %34 = sbr.rel (0) target = $region33
  $region32: #{tpu_custom_call.1} parent=0 // pred_region
    _
  $region33: #{tpu_custom_call.1} parent=0 // pred_fallthru
    _
  // Predicated region
  $region34: #{tpu_custom_call.1} parent=0 // pred_check
    _
  $region35: #{tpu_custom_call.1} parent=0 // pred_check_branch
    %36 = sbr.rel (0) target = $region37
  $region36: #{tpu_custom_call.1} parent=0 // pred_region
    _
  $region37: #{tpu_custom_call.1} parent=0 // pred_fallthru
    _
  // Predicated region
  $region38: #{tpu_custom_call.1} parent=0 // pred_check
    _
  $region39: #{tpu_custom_call.1} parent=0 // pred_check_branch
    %38 = sbr.rel (0) target = $region41
  $region40: #{tpu_custom_call.1} parent=0 // pred_region
    _
  $region41: #{tpu_custom_call.1} parent=0 // pred_fallthru
    _
  // Predicated region
  $region42: #{tpu_custom_call.1} parent=0 // pred_check
    _
  $region43: #{tpu_custom_call.1} parent=0 // pred_check_branch
    %40 = sbr.rel (0) target = $region45
  $region44: #{tpu_custom_call.1} parent=0 // pred_region
    _
  $region45: #{tpu_custom_call.1} parent=0 // pred_fallthru
    _
  %v41 = vld [vmem:[%s0] sm:$0xff]
  %v42 = vld [vmem:[%s0 + $0x8] sm:$0xff]
  %v43 = vld [vmem:[%s0 + $0x10] sm:$0xff]
  %v44 = vld [vmem:[%s0 + $0x18] sm:$0xff]
  %v45 = vld [vmem:[%s0 + $0x20] sm:$0xff]
  %v46 = vld [vmem:[%s0 + $0x28] sm:$0xff]
  %v47 = vld [vmem:[%s0 + $0x30] sm:$0xff]
  %v48 = vld [vmem:[%s0 + $0x38] sm:$0xff]
  %v49 = vld [vmem:[%s0 + $0x40] sm:$0xff]
  %v50 = vld [vmem:[%s2] sm:$0xff]
  %v51 = vld [vmem:[%s2 + $0x8] sm:$0xff]
  %v52 = vld [vmem:[%s2 + $0x10] sm:$0xff]
  %v53 = vld [vmem:[%s2 + $0x18] sm:$0xff]
  %v54 = vld [vmem:[%s3] sm:$0x1]
  %v56 = vlaneseq
  %v57 = vshrl.u32 %v56, 7
  %v58 = vsub.s32 0, %v57
  %v59 = vrot.slane %v54, %v58
  %vm61 = vcmask 261120
  %v63 = vsel %vm61, %v41, 0
  %v66 = vsel %vm61, %v42, 0
  %v69 = vsel %vm61, %v43, 0
  %v72 = vsel %vm61, %v44, 0
  %v75 = vsel %vm61, %v45, 0
  %v78 = vsel %vm61, %v46, 0
  %v81 = vsel %vm61, %v47, 0
  %v84 = vsel %vm61, %v48, 0
  %v87 = vsel %vm61, %v49, 0
  %89 = vmatprep.subr.mxu0 0.0
  %90 = vmatpush1.msra.mxu0 0.0
  %91 = vmatprep.subr.mxu0 0.0
  %92 = vmatpush1.msra.mxu0 0.0
  %93 = vmatprep.subr.mxu0 0.0
  %94 = vmatpush1.msra.mxu0 0.0
  %95 = vmatprep.subr.mxu0 0.0
  %96 = vmatpush1.msra.mxu0 0.0
  %97 = vmatprep.subr.mxu0 0.0
  %98 = vmatpush1.msra.mxu0 0.0
  %99 = vmatprep.subr.mxu0 0.0
  %100 = vmatpush1.msra.mxu0 0.0
  %101 = vmatprep.subr.mxu0 0.0
  %102 = vmatpush1.msra.mxu0 0.0
  %103 = vmatprep.subr.mxu0 0.0
  %104 = vmatpush1.msra.mxu0 0.0
  %105 = vmatprep.subr.mxu0 0.0
  %106 = vmatpush1.msra.mxu0 0.0
  %107 = vmatprep.subr.mxu0 0.0
  %108 = vmatpush1.msra.mxu0 0.0
  %109 = vmatprep.subr.mxu0 0.0
  %110 = vmatpush1.msra.mxu0 0.0
  %111 = vmatprep.subr.mxu0 0.0
  %112 = vmatpush1.msra.mxu0 0.0
  %113 = vmatprep.subr.mxu0 0.0
  %114 = vmatpush1.msra.mxu0 %v53
  %115 = vmatprep.subr.mxu0 0.0
  %116 = vmatpush1.msra.mxu0 %v52
  %117 = vmatprep.subr.mxu0 0.0
  %118 = vmatpush1.msra.mxu0 %v51
  %119 = vmatprep.subr.mxu0 0.0
  %120 = vmatpush1.msra.mxu0 %v50
  %121 = vmatprep.subr.mxu0 0.0
  %122 = vmatpush2.msra.mxu0 0.0
  %123 = vmatprep.subr.mxu0 0.0
  %124 = vmatpush2.msra.mxu0 0.0
  %125 = vmatprep.subr.mxu0 0.0
  %126 = vmatpush2.msra.mxu0 0.0
  %127 = vmatprep.subr.mxu0 0.0
  %128 = vmatpush2.msra.mxu0 0.0
  %129 = vmatprep.subr.mxu0 0.0
  %130 = vmatpush2.msra.mxu0 0.0
  %131 = vmatprep.subr.mxu0 0.0
  %132 = vmatpush2.msra.mxu0 0.0
  %133 = vmatprep.subr.mxu0 0.0
  %134 = vmatpush2.msra.mxu0 0.0
  %135 = vmatprep.subr.mxu0 0.0
  %136 = vmatpush2.msra.mxu0 0.0
  %137 = vmatprep.subr.mxu0 0.0
  %138 = vmatpush2.msra.mxu0 0.0
  %139 = vmatprep.subr.mxu0 0.0
  %140 = vmatpush2.msra.mxu0 0.0
  %141 = vmatprep.subr.mxu0 0.0
  %142 = vmatpush2.msra.mxu0 0.0
  %143 = vmatprep.subr.mxu0 0.0
  %144 = vmatpush2.msra.mxu0 0.0
  %145 = vmatprep.subr.mxu0 0.0
  %146 = vmatpush2.msra.mxu0 0.0
  %147 = vmatprep.subr.mxu0 0.0
  %148 = vmatpush2.msra.mxu0 0.0
  %149 = vmatprep.subr.mxu0 0.0
  %150 = vmatpush2.msra.mxu0 0.0
  %151 = vmatprep.subr.mxu0 0.0
  %152 = vmatpush2.msra.mxu0 0.0
  %153 = vmatprep.mubr.f32.mxu0 0.0
  %154 = vmatmul.mubr.f32.gmra.mxu0 %v63
  %v155 = vpop.f32.mrf.mxu0
  %v156 = vadd.f32 %v59, %v155
  %v157 = vpop.f32.mrf.mxu0
  %158 = vmatprep.mubr.f32.mxu0 0.0
  %159 = vmatmul.mubr.f32.gmra.mxu0 %v66
  %v160 = vpop.f32.mrf.mxu0
  %v161 = vadd.f32 %v59, %v160
  %v162 = vpop.f32.mrf.mxu0
  %163 = vmatprep.mubr.f32.mxu0 0.0
  %164 = vmatmul.mubr.f32.gmra.mxu0 %v69
  %v165 = vpop.f32.mrf.mxu0
  %v166 = vadd.f32 %v59, %v165
  %v167 = vpop.f32.mrf.mxu0
  %168 = vmatprep.mubr.f32.mxu0 0.0
  %169 = vmatmul.mubr.f32.gmra.mxu0 %v72
  %v170 = vpop.f32.mrf.mxu0
  %v171 = vadd.f32 %v59, %v170
  %v172 = vpop.f32.mrf.mxu0
  %173 = vmatprep.mubr.f32.mxu0 0.0
  %174 = vmatmul.mubr.f32.gmra.mxu0 %v75
  %v175 = vpop.f32.mrf.mxu0
  %v176 = vadd.f32 %v59, %v175
  %v177 = vpop.f32.mrf.mxu0
  %178 = vmatprep.mubr.f32.mxu0 0.0
  %179 = vmatmul.mubr.f32.gmra.mxu0 %v78
  %v180 = vpop.f32.mrf.mxu0
  %v181 = vadd.f32 %v59, %v180
  %v182 = vpop.f32.mrf.mxu0
  %183 = vmatprep.mubr.f32.mxu0 0.0
  %184 = vmatmul.mubr.f32.gmra.mxu0 %v81
  %v185 = vpop.f32.mrf.mxu0
  %v186 = vadd.f32 %v59, %v185
  %v187 = vpop.f32.mrf.mxu0
  %188 = vmatprep.mubr.f32.mxu0 0.0
  %189 = vmatmul.mubr.f32.gmra.mxu0 %v84
  %v190 = vpop.f32.mrf.mxu0
  %v191 = vadd.f32 %v59, %v190
  %v192 = vpop.f32.mrf.mxu0
  %193 = vmatprep.mubr.f32.mxu0 0.0
  %194 = vmatmul.mubr.f32.gmra.mxu0 %v87
  %v195 = vpop.f32.mrf.mxu0
  %v196 = vadd.f32 %v59, %v195
  %v197 = vpop.f32.mrf.mxu0
  %198 = vdwg.mxu0
  %vm199 = vcmask 523264
  %v200 = vsel %vm199, %v156, 0.0
  %201 = vadd.xlane.f32.xlu0 %v200
  %v202 = vpop.xlane.xlu0 %201
  %v203 = vsel %vm199, %v161, 0.0
  %204 = vadd.xlane.f32.xlu0 %v203
  %v205 = vpop.xlane.xlu0 %204
  %v206 = vsel %vm199, %v166, 0.0
  %207 = vadd.xlane.f32.xlu0 %v206
  %v208 = vpop.xlane.xlu0 %207
  %v209 = vsel %vm199, %v171, 0.0
  %210 = vadd.xlane.f32.xlu0 %v209
  %v211 = vpop.xlane.xlu0 %210
  %v212 = vsel %vm199, %v176, 0.0
  %213 = vadd.xlane.f32.xlu0 %v212
  %v214 = vpop.xlane.xlu0 %213
  %v215 = vsel %vm199, %v181, 0.0
  %216 = vadd.xlane.f32.xlu0 %v215
  %v217 = vpop.xlane.xlu0 %216
  %v218 = vsel %vm199, %v186, 0.0
  %219 = vadd.xlane.f32.xlu0 %v218
  %v220 = vpop.xlane.xlu0 %219
  %v221 = vsel %vm199, %v191, 0.0
  %222 = vadd.xlane.f32.xlu0 %v221
  %v223 = vpop.xlane.xlu0 %222
  %v224 = vsel %vm199, %v196, 0.0
  %225 = vadd.xlane.f32.xlu0 %v224
  %v226 = vpop.xlane.xlu0 %225
  %v227 = vrcp.pop 64.0
  %v228 = vmul.f32 %v202, %v227
  %v229 = vmul.f32 %v205, %v227
  %v230 = vmul.f32 %v208, %v227
  %v231 = vmul.f32 %v211, %v227
  %v232 = vmul.f32 %v214, %v227
  %v233 = vmul.f32 %v217, %v227
  %v234 = vmul.f32 %v220, %v227
  %v235 = vmul.f32 %v223, %v227
  %v236 = vmul.f32 %v226, %v227
  %v237 = vsub.f32 %v156, %v228
  %v238 = vsub.f32 %v161, %v229
  %v239 = vsub.f32 %v166, %v230
  %v240 = vsub.f32 %v171, %v231
  %v241 = vsub.f32 %v176, %v232
  %v242 = vsub.f32 %v181, %v233
  %v243 = vsub.f32 %v186, %v234
  %v244 = vsub.f32 %v191, %v235
  %v245 = vsub.f32 %v196, %v236
  %v246 = vmul.f32 %v237, %v237
  %v247 = vmul.f32 %v238, %v238
  %v248 = vmul.f32 %v239, %v239
  %v249 = vmul.f32 %v240, %v240
  %v250 = vmul.f32 %v241, %v241
  %v251 = vmul.f32 %v242, %v242
  %v252 = vmul.f32 %v243, %v243
  %v253 = vmul.f32 %v244, %v244
  %v254 = vmul.f32 %v245, %v245
  %v255 = vsel %vm199, %v246, 0.0
  %256 = vadd.xlane.f32.xlu0 %v255
  %v257 = vpop.xlane.xlu0 %256
  %v258 = vsel %vm199, %v247, 0.0
  %259 = vadd.xlane.f32.xlu0 %v258
  %v260 = vpop.xlane.xlu0 %259
  %v261 = vsel %vm199, %v248, 0.0
  %262 = vadd.xlane.f32.xlu0 %v261
  %v263 = vpop.xlane.xlu0 %262
  %v264 = vsel %vm199, %v249, 0.0
  %265 = vadd.xlane.f32.xlu0 %v264
  %v266 = vpop.xlane.xlu0 %265
  %v267 = vsel %vm199, %v250, 0.0
  %268 = vadd.xlane.f32.xlu0 %v267
  %v269 = vpop.xlane.xlu0 %268
  %v270 = vsel %vm199, %v251, 0.0
  %271 = vadd.xlane.f32.xlu0 %v270
  %v272 = vpop.xlane.xlu0 %271
  %v273 = vsel %vm199, %v252, 0.0
  %274 = vadd.xlane.f32.xlu0 %v273
  %v275 = vpop.xlane.xlu0 %274
  %v276 = vsel %vm199, %v253, 0.0
  %277 = vadd.xlane.f32.xlu0 %v276
  %v278 = vpop.xlane.xlu0 %277
  %v279 = vsel %vm199, %v254, 0.0
  %280 = vadd.xlane.f32.xlu0 %v279
  %v281 = vpop.xlane.xlu0 %280
  %v282 = vmul.f32 %v257, %v227
  %v283 = vmul.f32 %v260, %v227
  %v284 = vmul.f32 %v263, %v227
  %v285 = vmul.f32 %v266, %v227
  %v286 = vmul.f32 %v269, %v227
  %v287 = vmul.f32 %v272, %v227
  %v288 = vmul.f32 %v275, %v227
  %v289 = vmul.f32 %v278, %v227
  %v290 = vmul.f32 %v281, %v227
  %v291 = vadd.f32 %v282, 1e-05
  %v292 = vadd.f32 %v283, 1e-05
  %v293 = vadd.f32 %v284, 1e-05
  %v294 = vadd.f32 %v285, 1e-05
  %v295 = vadd.f32 %v286, 1e-05
  %v296 = vadd.f32 %v287, 1e-05
  %v297 = vadd.f32 %v288, 1e-05
  %v298 = vadd.f32 %v289, 1e-05
  %v299 = vadd.f32 %v290, 1e-05
  %v300 = vrsqrt.pop %v291
  %v301 = vrsqrt.pop %v292
  %v302 = vrsqrt.pop %v293
  %v303 = vrsqrt.pop %v294
  %v304 = vrsqrt.pop %v295
  %v305 = vrsqrt.pop %v296
  %v306 = vrsqrt.pop %v297
  %v307 = vrsqrt.pop %v298
  %v308 = vrsqrt.pop %v299
  %v309 = vmul.f32 %v237, %v300
  %v310 = vmul.f32 %v238, %v301
  %v311 = vmul.f32 %v239, %v302
  %v312 = vmul.f32 %v240, %v303
  %v313 = vmul.f32 %v241, %v304
  %v314 = vmul.f32 %v242, %v305
  %v315 = vmul.f32 %v243, %v306
  %v316 = vmul.f32 %v244, %v307
  %v317 = vmul.f32 %v245, %v308
  %v318 = vld [vmem:[%s4] sm:$0x1]
  %v320 = vlaneseq
  %v321 = vshrl.u32 %v320, 7
  %v322 = vsub.s32 0, %v321
  %v323 = vrot.slane %v318, %v322
  %v325 = vmul.f32 %v309, %v323
  %v326 = vmul.f32 %v310, %v323
  %v327 = vmul.f32 %v311, %v323
  %v328 = vmul.f32 %v312, %v323
  %v329 = vmul.f32 %v313, %v323
  %v330 = vmul.f32 %v314, %v323
  %v331 = vmul.f32 %v315, %v323
  %v332 = vmul.f32 %v316, %v323
  %v333 = vmul.f32 %v317, %v323
  %v334 = vld [vmem:[%s5] sm:$0x1]
  %v336 = vlaneseq
  %v337 = vshrl.u32 %v336, 7
  %v338 = vsub.s32 0, %v337
  %v339 = vrot.slane %v334, %v338
  %v341 = vadd.f32 %v325, %v339
  %v342 = vadd.f32 %v326, %v339
  %v343 = vadd.f32 %v327, %v339
  %v344 = vadd.f32 %v328, %v339
  %v345 = vadd.f32 %v329, %v339
  %v346 = vadd.f32 %v330, %v339
  %v347 = vadd.f32 %v331, %v339
  %v348 = vadd.f32 %v332, %v339
  %v349 = vadd.f32 %v333, %v339
  %v350 = vmax.f32 %v341, 0.0
  %v351 = vmax.f32 %v342, 0.0
  %v352 = vmax.f32 %v343, 0.0
  %v353 = vmax.f32 %v344, 0.0
  %v354 = vmax.f32 %v345, 0.0
  %v355 = vmax.f32 %v346, 0.0
  %v356 = vmax.f32 %v347, 0.0
  %v357 = vmax.f32 %v348, 0.0
  %v358 = vmax.f32 %v349, 0.0
  %359 = vst.msk [vmem:[%s11] sm:$0xff] %vm199, %v350
  %360 = vst.msk [vmem:[%s11 + $0x8] sm:$0xff] %vm199, %v351
  %361 = vst.msk [vmem:[%s11 + $0x10] sm:$0xff] %vm199, %v352
  %362 = vst.msk [vmem:[%s11 + $0x18] sm:$0xff] %vm199, %v353
  %363 = vst.msk [vmem:[%s11 + $0x20] sm:$0xff] %vm199, %v354
  %364 = vst.msk [vmem:[%s11 + $0x28] sm:$0xff] %vm199, %v355
  %365 = vst.msk [vmem:[%s11 + $0x30] sm:$0xff] %vm199, %v356
  %366 = vst.msk [vmem:[%s11 + $0x38] sm:$0xff] %vm199, %v357
  %367 = vst.msk [vmem:[%s11 + $0x40] sm:$0xff] %vm199, %v358
  %v368 = vld [vmem:[%s6] sm:$0xff]
  %v369 = vld [vmem:[%s6 + $0x8] sm:$0xff]
  %v370 = vld [vmem:[%s6 + $0x10] sm:$0xff]
  %v371 = vld [vmem:[%s6 + $0x18] sm:$0xff]
  %v372 = vld [vmem:[%s7] sm:$0x1]
  %v374 = vlaneseq
  %v375 = vshrl.u32 %v374, 7
  %v376 = vsub.s32 0, %v375
  %v377 = vrot.slane %v372, %v376
  %379 = vmatprep.subr.mxu0 0.0
  %380 = vmatpush1.msra.mxu0 0.0
  %381 = vmatprep.subr.mxu0 0.0
  %382 = vmatpush1.msra.mxu0 0.0
  %383 = vmatprep.subr.mxu0 0.0
  %384 = vmatpush1.msra.mxu0 0.0
  %385 = vmatprep.subr.mxu0 0.0
  %386 = vmatpush1.msra.mxu0 0.0
  %387 = vmatprep.subr.mxu0 0.0
  %388 = vmatpush1.msra.mxu0 0.0
  %389 = vmatprep.subr.mxu0 0.0
  %390 = vmatpush1.msra.mxu0 0.0
  %391 = vmatprep.subr.mxu0 0.0
  %392 = vmatpush1.msra.mxu0 0.0
  %393 = vmatprep.subr.mxu0 0.0
  %394 = vmatpush1.msra.mxu0 0.0
  %395 = vmatprep.subr.mxu0 0.0
  %396 = vmatpush1.msra.mxu0 0.0
  %397 = vmatprep.subr.mxu0 0.0
  %398 = vmatpush1.msra.mxu0 0.0
  %399 = vmatprep.subr.mxu0 0.0
  %400 = vmatpush1.msra.mxu0 0.0
  %401 = vmatprep.subr.mxu0 0.0
  %402 = vmatpush1.msra.mxu0 0.0
  %403 = vmatprep.subr.mxu0 0.0
  %404 = vmatpush1.msra.mxu0 %v371
  %405 = vmatprep.subr.mxu0 0.0
  %406 = vmatpush1.msra.mxu0 %v370
  %407 = vmatprep.subr.mxu0 0.0
  %408 = vmatpush1.msra.mxu0 %v369
  %409 = vmatprep.subr.mxu0 0.0
  %410 = vmatpush1.msra.mxu0 %v368
  %411 = vmatprep.subr.mxu0 0.0
  %412 = vmatpush2.msra.mxu0 0.0
  %413 = vmatprep.subr.mxu0 0.0
  %414 = vmatpush2.msra.mxu0 0.0
  %415 = vmatprep.subr.mxu0 0.0
  %416 = vmatpush2.msra.mxu0 0.0
  %417 = vmatprep.subr.mxu0 0.0
  %418 = vmatpush2.msra.mxu0 0.0
  %419 = vmatprep.subr.mxu0 0.0
  %420 = vmatpush2.msra.mxu0 0.0
  %421 = vmatprep.subr.mxu0 0.0
  %422 = vmatpush2.msra.mxu0 0.0
  %423 = vmatprep.subr.mxu0 0.0
  %424 = vmatpush2.msra.mxu0 0.0
  %425 = vmatprep.subr.mxu0 0.0
  %426 = vmatpush2.msra.mxu0 0.0
  %427 = vmatprep.subr.mxu0 0.0
  %428 = vmatpush2.msra.mxu0 0.0
  %429 = vmatprep.subr.mxu0 0.0
  %430 = vmatpush2.msra.mxu0 0.0
  %431 = vmatprep.subr.mxu0 0.0
  %432 = vmatpush2.msra.mxu0 0.0
  %433 = vmatprep.subr.mxu0 0.0
  %434 = vmatpush2.msra.mxu0 0.0
  %435 = vmatprep.subr.mxu0 0.0
  %436 = vmatpush2.msra.mxu0 0.0
  %437 = vmatprep.subr.mxu0 0.0
  %438 = vmatpush2.msra.mxu0 0.0
  %439 = vmatprep.subr.mxu0 0.0
  %440 = vmatpush2.msra.mxu0 0.0
  %441 = vmatprep.subr.mxu0 0.0
  %442 = vmatpush2.msra.mxu0 0.0
  %443 = vmatprep.mubr.f32.mxu0 0.0
  %444 = vmatmul.mubr.f32.gmra.mxu0 %v63
  %v445 = vpop.f32.mrf.mxu0
  %v446 = vadd.f32 %v377, %v445
  %v447 = vpop.f32.mrf.mxu0
  %448 = vmatprep.mubr.f32.mxu0 0.0
  %449 = vmatmul.mubr.f32.gmra.mxu0 %v66
  %v450 = vpop.f32.mrf.mxu0
  %v451 = vadd.f32 %v377, %v450
  %v452 = vpop.f32.mrf.mxu0
  %453 = vmatprep.mubr.f32.mxu0 0.0
  %454 = vmatmul.mubr.f32.gmra.mxu0 %v69
  %v455 = vpop.f32.mrf.mxu0
  %v456 = vadd.f32 %v377, %v455
  %v457 = vpop.f32.mrf.mxu0
  %458 = vmatprep.mubr.f32.mxu0 0.0
  %459 = vmatmul.mubr.f32.gmra.mxu0 %v72
  %v460 = vpop.f32.mrf.mxu0
  %v461 = vadd.f32 %v377, %v460
  %v462 = vpop.f32.mrf.mxu0
  %463 = vmatprep.mubr.f32.mxu0 0.0
  %464 = vmatmul.mubr.f32.gmra.mxu0 %v75
  %v465 = vpop.f32.mrf.mxu0
  %v466 = vadd.f32 %v377, %v465
  %v467 = vpop.f32.mrf.mxu0
  %468 = vmatprep.mubr.f32.mxu0 0.0
  %469 = vmatmul.mubr.f32.gmra.mxu0 %v78
  %v470 = vpop.f32.mrf.mxu0
  %v471 = vadd.f32 %v377, %v470
  %v472 = vpop.f32.mrf.mxu0
  %473 = vmatprep.mubr.f32.mxu0 0.0
  %474 = vmatmul.mubr.f32.gmra.mxu0 %v81
  %v475 = vpop.f32.mrf.mxu0
  %v476 = vadd.f32 %v377, %v475
  %v477 = vpop.f32.mrf.mxu0
  %478 = vmatprep.mubr.f32.mxu0 0.0
  %479 = vmatmul.mubr.f32.gmra.mxu0 %v84
  %v480 = vpop.f32.mrf.mxu0
  %v481 = vadd.f32 %v377, %v480
  %v482 = vpop.f32.mrf.mxu0
  %483 = vmatprep.mubr.f32.mxu0 0.0
  %484 = vmatmul.mubr.f32.gmra.mxu0 %v87
  %v485 = vpop.f32.mrf.mxu0
  %v486 = vadd.f32 %v377, %v485
  %v487 = vpop.f32.mrf.mxu0
  %488 = vdwg.mxu0
  %v489 = vmax.f32 %v446, 0.0
  %v490 = vmax.f32 %v451, 0.0
  %v491 = vmax.f32 %v456, 0.0
  %v492 = vmax.f32 %v461, 0.0
  %v493 = vmax.f32 %v466, 0.0
  %v494 = vmax.f32 %v471, 0.0
  %v495 = vmax.f32 %v476, 0.0
  %v496 = vmax.f32 %v481, 0.0
  %v497 = vmax.f32 %v486, 0.0
  %v498 = vld [vmem:[%s8] sm:$0xff]
  %v499 = vld [vmem:[%s8 + $0x8] sm:$0xff]
  %v500 = vld [vmem:[%s8 + $0x10] sm:$0xff]
  %v501 = vld [vmem:[%s8 + $0x18] sm:$0xff]
  %v502 = vld [vmem:[%s8 + $0x20] sm:$0xff]
  %v503 = vld [vmem:[%s8 + $0x28] sm:$0xff]
  %v504 = vld [vmem:[%s8 + $0x30] sm:$0xff]
  %v505 = vld [vmem:[%s8 + $0x38] sm:$0xff]
  %v506 = vld [vmem:[%s9] sm:$0x1]
  %v508 = vlaneseq
  %v509 = vshrl.u32 %v508, 7
  %v510 = vsub.s32 0, %v509
  %v511 = vrot.slane %v506, %v510
  %v514 = vsel %vm199, %v489, 0
  %v517 = vsel %vm199, %v490, 0
  %v520 = vsel %vm199, %v491, 0
  %v523 = vsel %vm199, %v492, 0
  %v526 = vsel %vm199, %v493, 0
  %v529 = vsel %vm199, %v494, 0
  %v532 = vsel %vm199, %v495, 0
  %v535 = vsel %vm199, %v496, 0
  %v538 = vsel %vm199, %v497, 0
  %540 = vmatprep.subr.mxu0 0.0
  %541 = vmatpush1.msra.mxu0 0.0
  %542 = vmatprep.subr.mxu0 0.0
  %543 = vmatpush1.msra.mxu0 0.0
  %544 = vmatprep.subr.mxu0 0.0
  %545 = vmatpush1.msra.mxu0 0.0
  %546 = vmatprep.subr.mxu0 0.0
  %547 = vmatpush1.msra.mxu0 0.0
  %548 = vmatprep.subr.mxu0 0.0
  %549 = vmatpush1.msra.mxu0 0.0
  %550 = vmatprep.subr.mxu0 0.0
  %551 = vmatpush1.msra.mxu0 0.0
  %552 = vmatprep.subr.mxu0 0.0
  %553 = vmatpush1.msra.mxu0 0.0
  %554 = vmatprep.subr.mxu0 0.0
  %555 = vmatpush1.msra.mxu0 0.0
  %556 = vmatprep.subr.mxu0 0.0
  %557 = vmatpush1.msra.mxu0 %v505
  %558 = vmatprep.subr.mxu0 0.0
  %559 = vmatpush1.msra.mxu0 %v504
  %560 = vmatprep.subr.mxu0 0.0
  %561 = vmatpush1.msra.mxu0 %v503
  %562 = vmatprep.subr.mxu0 0.0
  %563 = vmatpush1.msra.mxu0 %v502
  %564 = vmatprep.subr.mxu0 0.0
  %565 = vmatpush1.msra.mxu0 %v501
  %566 = vmatprep.subr.mxu0 0.0
  %567 = vmatpush1.msra.mxu0 %v500
  %568 = vmatprep.subr.mxu0 0.0
  %569 = vmatpush1.msra.mxu0 %v499
  %570 = vmatprep.subr.mxu0 0.0
  %571 = vmatpush1.msra.mxu0 %v498
  %572 = vmatprep.subr.mxu0 0.0
  %573 = vmatpush2.msra.mxu0 0.0
  %574 = vmatprep.subr.mxu0 0.0
  %575 = vmatpush2.msra.mxu0 0.0
  %576 = vmatprep.subr.mxu0 0.0
  %577 = vmatpush2.msra.mxu0 0.0
  %578 = vmatprep.subr.mxu0 0.0
  %579 = vmatpush2.msra.mxu0 0.0
  %580 = vmatprep.subr.mxu0 0.0
  %581 = vmatpush2.msra.mxu0 0.0
  %582 = vmatprep.subr.mxu0 0.0
  %583 = vmatpush2.msra.mxu0 0.0
  %584 = vmatprep.subr.mxu0 0.0
  %585 = vmatpush2.msra.mxu0 0.0
  %586 = vmatprep.subr.mxu0 0.0
  %587 = vmatpush2.msra.mxu0 0.0
  %588 = vmatprep.subr.mxu0 0.0
  %589 = vmatpush2.msra.mxu0 0.0
  %590 = vmatprep.subr.mxu0 0.0
  %591 = vmatpush2.msra.mxu0 0.0
  %592 = vmatprep.subr.mxu0 0.0
  %593 = vmatpush2.msra.mxu0 0.0
  %594 = vmatprep.subr.mxu0 0.0
  %595 = vmatpush2.msra.mxu0 0.0
  %596 = vmatprep.subr.mxu0 0.0
  %597 = vmatpush2.msra.mxu0 0.0
  %598 = vmatprep.subr.mxu0 0.0
  %599 = vmatpush2.msra.mxu0 0.0
  %600 = vmatprep.subr.mxu0 0.0
  %601 = vmatpush2.msra.mxu0 0.0
  %602 = vmatprep.subr.mxu0 0.0
  %603 = vmatpush2.msra.mxu0 0.0
  %604 = vmatprep.mubr.f32.mxu0 0.0
  %605 = vmatmul.mubr.f32.gmra.mxu0 %v514
  %v606 = vpop.f32.mrf.mxu0
  %v607 = vadd.f32 %v511, %v606
  %v608 = vpop.f32.mrf.mxu0
  %609 = vmatprep.mubr.f32.mxu0 0.0
  %610 = vmatmul.mubr.f32.gmra.mxu0 %v517
  %v611 = vpop.f32.mrf.mxu0
  %v612 = vadd.f32 %v511, %v611
  %v613 = vpop.f32.mrf.mxu0
  %614 = vmatprep.mubr.f32.mxu0 0.0
  %615 = vmatmul.mubr.f32.gmra.mxu0 %v520
  %v616 = vpop.f32.mrf.mxu0
  %v617 = vadd.f32 %v511, %v616
  %v618 = vpop.f32.mrf.mxu0
  %619 = vmatprep.mubr.f32.mxu0 0.0
  %620 = vmatmul.mubr.f32.gmra.mxu0 %v523
  %v621 = vpop.f32.mrf.mxu0
  %v622 = vadd.f32 %v511, %v621
  %v623 = vpop.f32.mrf.mxu0
  %624 = vmatprep.mubr.f32.mxu0 0.0
  %625 = vmatmul.mubr.f32.gmra.mxu0 %v526
  %v626 = vpop.f32.mrf.mxu0
  %v627 = vadd.f32 %v511, %v626
  %v628 = vpop.f32.mrf.mxu0
  %629 = vmatprep.mubr.f32.mxu0 0.0
  %630 = vmatmul.mubr.f32.gmra.mxu0 %v529
  %v631 = vpop.f32.mrf.mxu0
  %v632 = vadd.f32 %v511, %v631
  %v633 = vpop.f32.mrf.mxu0
  %634 = vmatprep.mubr.f32.mxu0 0.0
  %635 = vmatmul.mubr.f32.gmra.mxu0 %v532
  %v636 = vpop.f32.mrf.mxu0
  %v637 = vadd.f32 %v511, %v636
  %v638 = vpop.f32.mrf.mxu0
  %639 = vmatprep.mubr.f32.mxu0 0.0
  %640 = vmatmul.mubr.f32.gmra.mxu0 %v535
  %v641 = vpop.f32.mrf.mxu0
  %v642 = vadd.f32 %v511, %v641
  %v643 = vpop.f32.mrf.mxu0
  %644 = vmatprep.mubr.f32.mxu0 0.0
  %645 = vmatmul.mubr.f32.gmra.mxu0 %v538
  %v646 = vpop.f32.mrf.mxu0
  %v647 = vadd.f32 %v511, %v646
  %v648 = vpop.f32.mrf.mxu0
  %649 = vdwg.mxu0
  %650 = vst.msk [vmem:[%s12] sm:$0xff] %vm199, %v607
  %651 = vst.msk [vmem:[%s12 + $0x8] sm:$0xff] %vm199, %v612
  %652 = vst.msk [vmem:[%s12 + $0x10] sm:$0xff] %vm199, %v617
  %653 = vst.msk [vmem:[%s12 + $0x18] sm:$0xff] %vm199, %v622
  %654 = vst.msk [vmem:[%s12 + $0x20] sm:$0xff] %vm199, %v627
  %655 = vst.msk [vmem:[%s12 + $0x28] sm:$0xff] %vm199, %v632
  %656 = vst.msk [vmem:[%s12 + $0x30] sm:$0xff] %vm199, %v637
  %657 = vst.msk [vmem:[%s12 + $0x38] sm:$0xff] %vm199, %v642
  %658 = vst.msk [vmem:[%s12 + $0x40] sm:$0xff] %vm199, %v647
  %v659 = vld [vmem:[%s1] sm:$0xff]
  %v660 = vld [vmem:[%s1 + $0x8] sm:$0xff]
  %v661 = vld [vmem:[%s1 + $0x10] sm:$0xff]
  %v662 = vld [vmem:[%s1 + $0x18] sm:$0xff]
  %v663 = vld [vmem:[%s1 + $0x20] sm:$0xff]
  %v664 = vld [vmem:[%s1 + $0x28] sm:$0xff]
  %v665 = vld [vmem:[%s1 + $0x30] sm:$0xff]
  %v666 = vld [vmem:[%s1 + $0x38] sm:$0xff]
  %v667 = vld [vmem:[%s1 + $0x40] sm:$0xff]
  %v668 = vld [vmem:[%s10] sm:$0x7]
  %vm669 = vcmask 23552
  %v671 = vsel %vm669, %v659, 0
  %v674 = vsel %vm669, %v660, 0
  %v677 = vsel %vm669, %v661, 0
  %v680 = vsel %vm669, %v662, 0
  %v683 = vsel %vm669, %v663, 0
  %v686 = vsel %vm669, %v664, 0
  %v689 = vsel %vm669, %v665, 0
  %v692 = vsel %vm669, %v666, 0
  %v695 = vsel %vm669, %v667, 0
  %vm697 = vcmask 1042432
  %v699 = vsel %vm697, %v668, 0
  %701 = vmatprep.subr.mxu0 0.0
  %702 = vmatpush1.msra.mxu0 0.0
  %703 = vmatprep.subr.mxu0 0.0
  %704 = vmatpush1.msra.mxu0 0.0
  %705 = vmatprep.subr.mxu0 0.0
  %706 = vmatpush1.msra.mxu0 0.0
  %707 = vmatprep.subr.mxu0 0.0
  %708 = vmatpush1.msra.mxu0 0.0
  %709 = vmatprep.subr.mxu0 0.0
  %710 = vmatpush1.msra.mxu0 0.0
  %711 = vmatprep.subr.mxu0 0.0
  %712 = vmatpush1.msra.mxu0 0.0
  %713 = vmatprep.subr.mxu0 0.0
  %714 = vmatpush1.msra.mxu0 0.0
  %715 = vmatprep.subr.mxu0 0.0
  %716 = vmatpush1.msra.mxu0 0.0
  %717 = vmatprep.subr.mxu0 0.0
  %718 = vmatpush1.msra.mxu0 0.0
  %719 = vmatprep.subr.mxu0 0.0
  %720 = vmatpush1.msra.mxu0 0.0
  %721 = vmatprep.subr.mxu0 0.0
  %722 = vmatpush1.msra.mxu0 0.0
  %723 = vmatprep.subr.mxu0 0.0
  %724 = vmatpush1.msra.mxu0 0.0
  %725 = vmatprep.subr.mxu0 0.0
  %726 = vmatpush1.msra.mxu0 0.0
  %727 = vmatprep.subr.mxu0 0.0
  %728 = vmatpush1.msra.mxu0 0.0
  %729 = vmatprep.subr.mxu0 0.0
  %730 = vmatpush1.msra.mxu0 0.0
  %731 = vmatprep.subr.mxu0 0.0
  %732 = vmatpush1.msra.mxu0 %v699
  %733 = vmatprep.subr.mxu0 0.0
  %734 = vmatpush2.msra.mxu0 0.0
  %735 = vmatprep.subr.mxu0 0.0
  %736 = vmatpush2.msra.mxu0 0.0
  %737 = vmatprep.subr.mxu0 0.0
  %738 = vmatpush2.msra.mxu0 0.0
  %739 = vmatprep.subr.mxu0 0.0
  %740 = vmatpush2.msra.mxu0 0.0
  %741 = vmatprep.subr.mxu0 0.0
  %742 = vmatpush2.msra.mxu0 0.0
  %743 = vmatprep.subr.mxu0 0.0
  %744 = vmatpush2.msra.mxu0 0.0
  %745 = vmatprep.subr.mxu0 0.0
  %746 = vmatpush2.msra.mxu0 0.0
  %747 = vmatprep.subr.mxu0 0.0
  %748 = vmatpush2.msra.mxu0 0.0
  %749 = vmatprep.subr.mxu0 0.0
  %750 = vmatpush2.msra.mxu0 0.0
  %751 = vmatprep.subr.mxu0 0.0
  %752 = vmatpush2.msra.mxu0 0.0
  %753 = vmatprep.subr.mxu0 0.0
  %754 = vmatpush2.msra.mxu0 0.0
  %755 = vmatprep.subr.mxu0 0.0
  %756 = vmatpush2.msra.mxu0 0.0
  %757 = vmatprep.subr.mxu0 0.0
  %758 = vmatpush2.msra.mxu0 0.0
  %759 = vmatprep.subr.mxu0 0.0
  %760 = vmatpush2.msra.mxu0 0.0
  %761 = vmatprep.subr.mxu0 0.0
  %762 = vmatpush2.msra.mxu0 0.0
  %763 = vmatprep.subr.mxu0 0.0
  %764 = vmatpush2.msra.mxu0 0.0
  %765 = vmatprep.mubr.f32.mxu0 0.0
  %766 = vmatmul.mubr.f32.gmra.mxu0 %v671
  %v767 = vpop.f32.mrf.mxu0
  %v768 = vadd.f32 0.0, %v767
  %v769 = vpop.f32.mrf.mxu0
  %770 = vmatprep.mubr.f32.mxu0 0.0
  %771 = vmatmul.mubr.f32.gmra.mxu0 %v674
  %v772 = vpop.f32.mrf.mxu0
  %v773 = vadd.f32 0.0, %v772
  %v774 = vpop.f32.mrf.mxu0
  %775 = vmatprep.mubr.f32.mxu0 0.0
  %776 = vmatmul.mubr.f32.gmra.mxu0 %v677
  %v777 = vpop.f32.mrf.mxu0
  %v778 = vadd.f32 0.0, %v777
  %v779 = vpop.f32.mrf.mxu0
  %780 = vmatprep.mubr.f32.mxu0 0.0
  %781 = vmatmul.mubr.f32.gmra.mxu0 %v680
  %v782 = vpop.f32.mrf.mxu0
  %v783 = vadd.f32 0.0, %v782
  %v784 = vpop.f32.mrf.mxu0
  %785 = vmatprep.mubr.f32.mxu0 0.0
  %786 = vmatmul.mubr.f32.gmra.mxu0 %v683
  %v787 = vpop.f32.mrf.mxu0
  %v788 = vadd.f32 0.0, %v787
  %v789 = vpop.f32.mrf.mxu0
  %790 = vmatprep.mubr.f32.mxu0 0.0
  %791 = vmatmul.mubr.f32.gmra.mxu0 %v686
  %v792 = vpop.f32.mrf.mxu0
  %v793 = vadd.f32 0.0, %v792
  %v794 = vpop.f32.mrf.mxu0
  %795 = vmatprep.mubr.f32.mxu0 0.0
  %796 = vmatmul.mubr.f32.gmra.mxu0 %v689
  %v797 = vpop.f32.mrf.mxu0
  %v798 = vadd.f32 0.0, %v797
  %v799 = vpop.f32.mrf.mxu0
  %800 = vmatprep.mubr.f32.mxu0 0.0
  %801 = vmatmul.mubr.f32.gmra.mxu0 %v692
  %v802 = vpop.f32.mrf.mxu0
  %v803 = vadd.f32 0.0, %v802
  %v804 = vpop.f32.mrf.mxu0
  %805 = vmatprep.mubr.f32.mxu0 0.0
  %806 = vmatmul.mubr.f32.gmra.mxu0 %v695
  %v807 = vpop.f32.mrf.mxu0
  %v808 = vadd.f32 0.0, %v807
  %v809 = vpop.f32.mrf.mxu0
  %810 = vdwg.mxu0
  %v811 = vmul.f32 %v768, 6.2831855
  %v812 = vmul.f32 %v773, 6.2831855
  %v813 = vmul.f32 %v778, 6.2831855
  %v814 = vmul.f32 %v783, 6.2831855
  %v815 = vmul.f32 %v788, 6.2831855
  %v816 = vmul.f32 %v793, 6.2831855
  %v817 = vmul.f32 %v798, 6.2831855
  %v818 = vmul.f32 %v803, 6.2831855
  %v819 = vmul.f32 %v808, 6.2831855
  %v820 = vand.u32 2147483647, %v811
  %vm821 = vcmp.le.f32.partialorder %v820, 0.7853982
  %vm822 = vcmp.lt.s32.totalorder %v811, 0
  %v823 = vand.u32 %v811, 2139095040
  %v824 = vshrl.u32 %v823, 23
  %v825 = vsub.s32 %v824, 127
  %v826 = vand.u32 2147483647, %v811
  %v827 = vand.u32 %v826, 8388607
  %v828 = vor.u32 %v827, 8388608
  %v829 = vsub.s32 0, %v828
  %v830 = vadd.s32 %v825, 1
  %vm831 = vcmp.gt.s32.totalorder %v830, 0
  %v832 = vsel %vm831, %v830, 0
  %v833 = vshrl.u32 %v832, 5
  %v834 = vand.u32 %v832, 31
  %v835 = vsub.s32 32, %v834
  %v836 = vshrl.u32 683565275, %v835
  %v837 = vshll.u32 683565275, %v834
  %v838 = vshrl.u32 2475754826, %v835
  %v839 = vor.u32 %v837, %v838
  %v840 = vshll.u32 2475754826, %v834
  %v841 = vshrl.u32 2131351028, %v835
  %v842 = vor.u32 %v840, %v841
  %v843 = vshll.u32 2131351028, %v834
  %v844 = vshrl.u32 2102212464, %v835
  %v845 = vor.u32 %v843, %v844
  %v846 = vshll.u32 2102212464, %v834
  %v847 = vshrl.u32 920167782, %v835
  %v848 = vor.u32 %v846, %v847
  %v849 = vshll.u32 920167782, %v834
  %v850 = vshrl.u32 1326507024, %v835
  %v851 = vor.u32 %v849, %v850
  %vm852 = vcmp.lt.s32.totalorder %v833, 1
  %vm853 = vcmp.lt.s32.totalorder %v833, 2
  %vm854 = vcmp.lt.s32.totalorder %v833, 3
  %vm855 = vcmp.lt.s32.totalorder %v833, 4
  %v856 = vsel %vm852, %v836, %v839
  %v857 = vsel %vm855, %v845, 2102212464
  %v858 = vsel %vm854, %v842, %v857
  %v859 = vsel %vm853, %v856, %v858
  %v860 = vsel %vm852, %v839, %v842
  %v861 = vsel %vm855, %v848, 920167782
  %v862 = vsel %vm854, %v845, %v861
  %v863 = vsel %vm853, %v860, %v862
  %v864 = vsel %vm852, %v842, %v845
  %v865 = vsel %vm855, %v851, 1326507024
  %v866 = vsel %vm854, %v848, %v865
  %v867 = vsel %vm853, %v864, %v866
  %v868 = vshll.u32 %v828, 8
  %v869 = vmul.u32.u64.compose %v868, %v867
  %v870 = vextract.low.u32 %v869
  %v871 = vextract.high.u32 %v869
  %v872 = vmul.u32.u64.compose %v868, %v863
  %v873 = vextract.low.u32 %v872
  %v874 = vextract.high.u32 %v872
  %v875 = vmul.u32 %v868, %v859
  %v876 = vadd.s32 %v871, %v873
  %vm877 = vc.u32 %v871, %v873
  %v878 = vadd.s32 %v874, 1
  %v879 = vsel %vm877, %v878, %v874
  %v880 = vadd.s32 %v875, %v879
  %v881 = vadd.s32 %v880, 536870912
  %v882 = vshrl.u32 %v881, 30
  %v883 = vshll.u32 %v882, 30
  %v884 = vsub.s32 %v880, %v883
  %vm885 = vcmp.lt.s32.totalorder %v884, 0
  %v886 = vsub.s32 0, %v884
  %v887 = vsel %vm885, %v886, %v884
  %v888 = vclz %v887
  %v889 = vsub.s32 %v888, 2
  %vm890 = vcmp.gt.s32.totalorder 0, %v889
  %v891 = vsel %vm890, 0, %v889
  %v892 = vsub.s32 32, %v891
  %v893 = vshll.u32 %v884, %v891
  %v894 = vshrl.u32 %v876, %v892
  %v895 = vor.u32 %v893, %v894
  %v896 = vsub.s32 4294967266, %v891
  %v897 = vadd.s32 %v896, 127
  %v898 = vshll.u32 %v897, 23
  %v899 = vor.u32 4788187, %v898
  %v900 = vand.u32 2147483647, %v899
  %v902 = vcvt.s32.f32 %v895
  %v903 = vmul.f32 %v902, %v900
  %v904 = vxor.u32 %v903, 2147483648
  %v905 = vsel %vm822, %v904, %v903
  %v906 = vsub.s32 4, %v882
  %v907 = vsel %vm822, %v906, %v882
  %v908 = vsel %vm821, %v811, %v905
  %v909 = vsel %vm821, 0, %v907
  %v910 = vcosq.f32.pop %v908
  %v911 = vsinq.f32.pop %v908
  %vm912 = vweird.f32 %v811
  %v913 = vadd.s32 %v909, 3
  %v914 = vand.u32 %v913, 3
  %vm915 = vcmp.lt.s32.totalorder %v914, 2
  %vm916 = vcmp.eq.s32.totalorder %v914, 0
  %v917 = vxor.u32 %v911, 2147483648
  %v918 = vsel %vm916, %v910, %v917
  %vm919 = vcmp.eq.s32.totalorder %v914, 2
  %v920 = vxor.u32 %v910, 2147483648
  %v921 = vsel %vm919, %v920, %v911
  %v922 = vsel %vm915, %v918, %v921
  %v923 = vsel %vm912, nan, %v922
  %v924 = vand.u32 2147483647, %v812
  %vm925 = vcmp.le.f32.partialorder %v924, 0.7853982
  %vm926 = vcmp.lt.s32.totalorder %v812, 0
  %v927 = vand.u32 %v812, 2139095040
  %v928 = vshrl.u32 %v927, 23
  %v929 = vsub.s32 %v928, 127
  %v930 = vand.u32 2147483647, %v812
  %v931 = vand.u32 %v930, 8388607
  %v932 = vor.u32 %v931, 8388608
  %v933 = vsub.s32 0, %v932
  %v934 = vadd.s32 %v929, 1
  %vm935 = vcmp.gt.s32.totalorder %v934, 0
  %v936 = vsel %vm935, %v934, 0
  %v937 = vshrl.u32 %v936, 5
  %v938 = vand.u32 %v936, 31
  %v939 = vsub.s32 32, %v938
  %v940 = vshrl.u32 683565275, %v939
  %v941 = vshll.u32 683565275, %v938
  %v942 = vshrl.u32 2475754826, %v939
  %v943 = vor.u32 %v941, %v942
  %v944 = vshll.u32 2475754826, %v938
  %v945 = vshrl.u32 2131351028, %v939
  %v946 = vor.u32 %v944, %v945
  %v947 = vshll.u32 2131351028, %v938
  %v948 = vshrl.u32 2102212464, %v939
  %v949 = vor.u32 %v947, %v948
  %v950 = vshll.u32 2102212464, %v938
  %v951 = vshrl.u32 920167782, %v939
  %v952 = vor.u32 %v950, %v951
  %v953 = vshll.u32 920167782, %v938
  %v954 = vshrl.u32 1326507024, %v939
  %v955 = vor.u32 %v953, %v954
  %vm956 = vcmp.lt.s32.totalorder %v937, 1
  %vm957 = vcmp.lt.s32.totalorder %v937, 2
  %vm958 = vcmp.lt.s32.totalorder %v937, 3
  %vm959 = vcmp.lt.s32.totalorder %v937, 4
  %v960 = vsel %vm956, %v940, %v943
  %v961 = vsel %vm959, %v949, 2102212464
  %v962 = vsel %vm958, %v946, %v961
  %v963 = vsel %vm957, %v960, %v962
  %v964 = vsel %vm956, %v943, %v946
  %v965 = vsel %vm959, %v952, 920167782
  %v966 = vsel %vm958, %v949, %v965
  %v967 = vsel %vm957, %v964, %v966
  %v968 = vsel %vm956, %v946, %v949
  %v969 = vsel %vm959, %v955, 1326507024
  %v970 = vsel %vm958, %v952, %v969
  %v971 = vsel %vm957, %v968, %v970
  %v972 = vshll.u32 %v932, 8
  %v973 = vmul.u32.u64.compose %v972, %v971
  %v974 = vextract.low.u32 %v973
  %v975 = vextract.high.u32 %v973
  %v976 = vmul.u32.u64.compose %v972, %v967
  %v977 = vextract.low.u32 %v976
  %v978 = vextract.high.u32 %v976
  %v979 = vmul.u32 %v972, %v963
  %v980 = vadd.s32 %v975, %v977
  %vm981 = vc.u32 %v975, %v977
  %v982 = vadd.s32 %v978, 1
  %v983 = vsel %vm981, %v982, %v978
  %v984 = vadd.s32 %v979, %v983
  %v985 = vadd.s32 %v984, 536870912
  %v986 = vshrl.u32 %v985, 30
  %v987 = vshll.u32 %v986, 30
  %v988 = vsub.s32 %v984, %v987
  %vm989 = vcmp.lt.s32.totalorder %v988, 0
  %v990 = vsub.s32 0, %v988
  %v991 = vsel %vm989, %v990, %v988
  %v992 = vclz %v991
  %v993 = vsub.s32 %v992, 2
  %vm994 = vcmp.gt.s32.totalorder 0, %v993
  %v995 = vsel %vm994, 0, %v993
  %v996 = vsub.s32 32, %v995
  %v997 = vshll.u32 %v988, %v995
  %v998 = vshrl.u32 %v980, %v996
  %v999 = vor.u32 %v997, %v998
  %v1000 = vsub.s32 4294967266, %v995
  %v1001 = vadd.s32 %v1000, 127
  %v1002 = vshll.u32 %v1001, 23
  %v1003 = vor.u32 4788187, %v1002
  %v1004 = vand.u32 2147483647, %v1003
  %v1006 = vcvt.s32.f32 %v999
  %v1007 = vmul.f32 %v1006, %v1004
  %v1008 = vxor.u32 %v1007, 2147483648
  %v1009 = vsel %vm926, %v1008, %v1007
  %v1010 = vsub.s32 4, %v986
  %v1011 = vsel %vm926, %v1010, %v986
  %v1012 = vsel %vm925, %v812, %v1009
  %v1013 = vsel %vm925, 0, %v1011
  %v1014 = vcosq.f32.pop %v1012
  %v1015 = vsinq.f32.pop %v1012
  %vm1016 = vweird.f32 %v812
  %v1017 = vadd.s32 %v1013, 3
  %v1018 = vand.u32 %v1017, 3
  %vm1019 = vcmp.lt.s32.totalorder %v1018, 2
  %vm1020 = vcmp.eq.s32.totalorder %v1018, 0
  %v1021 = vxor.u32 %v1015, 2147483648
  %v1022 = vsel %vm1020, %v1014, %v1021
  %vm1023 = vcmp.eq.s32.totalorder %v1018, 2
  %v1024 = vxor.u32 %v1014, 2147483648
  %v1025 = vsel %vm1023, %v1024, %v1015
  %v1026 = vsel %vm1019, %v1022, %v1025
  %v1027 = vsel %vm1016, nan, %v1026
  %v1028 = vand.u32 2147483647, %v813
  %vm1029 = vcmp.le.f32.partialorder %v1028, 0.7853982
  %vm1030 = vcmp.lt.s32.totalorder %v813, 0
  %v1031 = vand.u32 %v813, 2139095040
  %v1032 = vshrl.u32 %v1031, 23
  %v1033 = vsub.s32 %v1032, 127
  %v1034 = vand.u32 2147483647, %v813
  %v1035 = vand.u32 %v1034, 8388607
  %v1036 = vor.u32 %v1035, 8388608
  %v1037 = vsub.s32 0, %v1036
  %v1038 = vadd.s32 %v1033, 1
  %vm1039 = vcmp.gt.s32.totalorder %v1038, 0
  %v1040 = vsel %vm1039, %v1038, 0
  %v1041 = vshrl.u32 %v1040, 5
  %v1042 = vand.u32 %v1040, 31
  %v1043 = vsub.s32 32, %v1042
  %v1044 = vshrl.u32 683565275, %v1043
  %v1045 = vshll.u32 683565275, %v1042
  %v1046 = vshrl.u32 2475754826, %v1043
  %v1047 = vor.u32 %v1045, %v1046
  %v1048 = vshll.u32 2475754826, %v1042
  %v1049 = vshrl.u32 2131351028, %v1043
  %v1050 = vor.u32 %v1048, %v1049
  %v1051 = vshll.u32 2131351028, %v1042
  %v1052 = vshrl.u32 2102212464, %v1043
  %v1053 = vor.u32 %v1051, %v1052
  %v1054 = vshll.u32 2102212464, %v1042
  %v1055 = vshrl.u32 920167782, %v1043
  %v1056 = vor.u32 %v1054, %v1055
  %v1057 = vshll.u32 920167782, %v1042
  %v1058 = vshrl.u32 1326507024, %v1043
  %v1059 = vor.u32 %v1057, %v1058
  %vm1060 = vcmp.lt.s32.totalorder %v1041, 1
  %vm1061 = vcmp.lt.s32.totalorder %v1041, 2
  %vm1062 = vcmp.lt.s32.totalorder %v1041, 3
  %vm1063 = vcmp.lt.s32.totalorder %v1041, 4
  %v1064 = vsel %vm1060, %v1044, %v1047
  %v1065 = vsel %vm1063, %v1053, 2102212464
  %v1066 = vsel %vm1062, %v1050, %v1065
  %v1067 = vsel %vm1061, %v1064, %v1066
  %v1068 = vsel %vm1060, %v1047, %v1050
  %v1069 = vsel %vm1063, %v1056, 920167782
  %v1070 = vsel %vm1062, %v1053, %v1069
  %v1071 = vsel %vm1061, %v1068, %v1070
  %v1072 = vsel %vm1060, %v1050, %v1053
  %v1073 = vsel %vm1063, %v1059, 1326507024
  %v1074 = vsel %vm1062, %v1056, %v1073
  %v1075 = vsel %vm1061, %v1072, %v1074
  %v1076 = vshll.u32 %v1036, 8
  %v1077 = vmul.u32.u64.compose %v1076, %v1075
  %v1078 = vextract.low.u32 %v1077
  %v1079 = vextract.high.u32 %v1077
  %v1080 = vmul.u32.u64.compose %v1076, %v1071
  %v1081 = vextract.low.u32 %v1080
  %v1082 = vextract.high.u32 %v1080
  %v1083 = vmul.u32 %v1076, %v1067
  %v1084 = vadd.s32 %v1079, %v1081
  %vm1085 = vc.u32 %v1079, %v1081
  %v1086 = vadd.s32 %v1082, 1
  %v1087 = vsel %vm1085, %v1086, %v1082
  %v1088 = vadd.s32 %v1083, %v1087
  %v1089 = vadd.s32 %v1088, 536870912
  %v1090 = vshrl.u32 %v1089, 30
  %v1091 = vshll.u32 %v1090, 30
  %v1092 = vsub.s32 %v1088, %v1091
  %vm1093 = vcmp.lt.s32.totalorder %v1092, 0
  %v1094 = vsub.s32 0, %v1092
  %v1095 = vsel %vm1093, %v1094, %v1092
  %v1096 = vclz %v1095
  %v1097 = vsub.s32 %v1096, 2
  %vm1098 = vcmp.gt.s32.totalorder 0, %v1097
  %v1099 = vsel %vm1098, 0, %v1097
  %v1100 = vsub.s32 32, %v1099
  %v1101 = vshll.u32 %v1092, %v1099
  %v1102 = vshrl.u32 %v1084, %v1100
  %v1103 = vor.u32 %v1101, %v1102
  %v1104 = vsub.s32 4294967266, %v1099
  %v1105 = vadd.s32 %v1104, 127
  %v1106 = vshll.u32 %v1105, 23
  %v1107 = vor.u32 4788187, %v1106
  %v1108 = vand.u32 2147483647, %v1107
  %v1110 = vcvt.s32.f32 %v1103
  %v1111 = vmul.f32 %v1110, %v1108
  %v1112 = vxor.u32 %v1111, 2147483648
  %v1113 = vsel %vm1030, %v1112, %v1111
  %v1114 = vsub.s32 4, %v1090
  %v1115 = vsel %vm1030, %v1114, %v1090
  %v1116 = vsel %vm1029, %v813, %v1113
  %v1117 = vsel %vm1029, 0, %v1115
  %v1118 = vcosq.f32.pop %v1116
  %v1119 = vsinq.f32.pop %v1116
  %vm1120 = vweird.f32 %v813
  %v1121 = vadd.s32 %v1117, 3
  %v1122 = vand.u32 %v1121, 3
  %vm1123 = vcmp.lt.s32.totalorder %v1122, 2
  %vm1124 = vcmp.eq.s32.totalorder %v1122, 0
  %v1125 = vxor.u32 %v1119, 2147483648
  %v1126 = vsel %vm1124, %v1118, %v1125
  %vm1127 = vcmp.eq.s32.totalorder %v1122, 2
  %v1128 = vxor.u32 %v1118, 2147483648
  %v1129 = vsel %vm1127, %v1128, %v1119
  %v1130 = vsel %vm1123, %v1126, %v1129
  %v1131 = vsel %vm1120, nan, %v1130
  %v1132 = vand.u32 2147483647, %v814
  %vm1133 = vcmp.le.f32.partialorder %v1132, 0.7853982
  %vm1134 = vcmp.lt.s32.totalorder %v814, 0
  %v1135 = vand.u32 %v814, 2139095040
  %v1136 = vshrl.u32 %v1135, 23
  %v1137 = vsub.s32 %v1136, 127
  %v1138 = vand.u32 2147483647, %v814
  %v1139 = vand.u32 %v1138, 8388607
  %v1140 = vor.u32 %v1139, 8388608
  %v1141 = vsub.s32 0, %v1140
  %v1142 = vadd.s32 %v1137, 1
  %vm1143 = vcmp.gt.s32.totalorder %v1142, 0
  %v1144 = vsel %vm1143, %v1142, 0
  %v1145 = vshrl.u32 %v1144, 5
  %v1146 = vand.u32 %v1144, 31
  %v1147 = vsub.s32 32, %v1146
  %v1148 = vshrl.u32 683565275, %v1147
  %v1149 = vshll.u32 683565275, %v1146
  %v1150 = vshrl.u32 2475754826, %v1147
  %v1151 = vor.u32 %v1149, %v1150
  %v1152 = vshll.u32 2475754826, %v1146
  %v1153 = vshrl.u32 2131351028, %v1147
  %v1154 = vor.u32 %v1152, %v1153
  %v1155 = vshll.u32 2131351028, %v1146
  %v1156 = vshrl.u32 2102212464, %v1147
  %v1157 = vor.u32 %v1155, %v1156
  %v1158 = vshll.u32 2102212464, %v1146
  %v1159 = vshrl.u32 920167782, %v1147
  %v1160 = vor.u32 %v1158, %v1159
  %v1161 = vshll.u32 920167782, %v1146
  %v1162 = vshrl.u32 1326507024, %v1147
  %v1163 = vor.u32 %v1161, %v1162
  %vm1164 = vcmp.lt.s32.totalorder %v1145, 1
  %vm1165 = vcmp.lt.s32.totalorder %v1145, 2
  %vm1166 = vcmp.lt.s32.totalorder %v1145, 3
  %vm1167 = vcmp.lt.s32.totalorder %v1145, 4
  %v1168 = vsel %vm1164, %v1148, %v1151
  %v1169 = vsel %vm1167, %v1157, 2102212464
  %v1170 = vsel %vm1166, %v1154, %v1169
  %v1171 = vsel %vm1165, %v1168, %v1170
  %v1172 = vsel %vm1164, %v1151, %v1154
  %v1173 = vsel %vm1167, %v1160, 920167782
  %v1174 = vsel %vm1166, %v1157, %v1173
  %v1175 = vsel %vm1165, %v1172, %v1174
  %v1176 = vsel %vm1164, %v1154, %v1157
  %v1177 = vsel %vm1167, %v1163, 1326507024
  %v1178 = vsel %vm1166, %v1160, %v1177
  %v1179 = vsel %vm1165, %v1176, %v1178
  %v1180 = vshll.u32 %v1140, 8
  %v1181 = vmul.u32.u64.compose %v1180, %v1179
  %v1182 = vextract.low.u32 %v1181
  %v1183 = vextract.high.u32 %v1181
  %v1184 = vmul.u32.u64.compose %v1180, %v1175
  %v1185 = vextract.low.u32 %v1184
  %v1186 = vextract.high.u32 %v1184
  %v1187 = vmul.u32 %v1180, %v1171
  %v1188 = vadd.s32 %v1183, %v1185
  %vm1189 = vc.u32 %v1183, %v1185
  %v1190 = vadd.s32 %v1186, 1
  %v1191 = vsel %vm1189, %v1190, %v1186
  %v1192 = vadd.s32 %v1187, %v1191
  %v1193 = vadd.s32 %v1192, 536870912
  %v1194 = vshrl.u32 %v1193, 30
  %v1195 = vshll.u32 %v1194, 30
  %v1196 = vsub.s32 %v1192, %v1195
  %vm1197 = vcmp.lt.s32.totalorder %v1196, 0
  %v1198 = vsub.s32 0, %v1196
  %v1199 = vsel %vm1197, %v1198, %v1196
  %v1200 = vclz %v1199
  %v1201 = vsub.s32 %v1200, 2
  %vm1202 = vcmp.gt.s32.totalorder 0, %v1201
  %v1203 = vsel %vm1202, 0, %v1201
  %v1204 = vsub.s32 32, %v1203
  %v1205 = vshll.u32 %v1196, %v1203
  %v1206 = vshrl.u32 %v1188, %v1204
  %v1207 = vor.u32 %v1205, %v1206
  %v1208 = vsub.s32 4294967266, %v1203
  %v1209 = vadd.s32 %v1208, 127
  %v1210 = vshll.u32 %v1209, 23
  %v1211 = vor.u32 4788187, %v1210
  %v1212 = vand.u32 2147483647, %v1211
  %v1214 = vcvt.s32.f32 %v1207
  %v1215 = vmul.f32 %v1214, %v1212
  %v1216 = vxor.u32 %v1215, 2147483648
  %v1217 = vsel %vm1134, %v1216, %v1215
  %v1218 = vsub.s32 4, %v1194
  %v1219 = vsel %vm1134, %v1218, %v1194
  %v1220 = vsel %vm1133, %v814, %v1217
  %v1221 = vsel %vm1133, 0, %v1219
  %v1222 = vcosq.f32.pop %v1220
  %v1223 = vsinq.f32.pop %v1220
  %vm1224 = vweird.f32 %v814
  %v1225 = vadd.s32 %v1221, 3
  %v1226 = vand.u32 %v1225, 3
  %vm1227 = vcmp.lt.s32.totalorder %v1226, 2
  %vm1228 = vcmp.eq.s32.totalorder %v1226, 0
  %v1229 = vxor.u32 %v1223, 2147483648
  %v1230 = vsel %vm1228, %v1222, %v1229
  %vm1231 = vcmp.eq.s32.totalorder %v1226, 2
  %v1232 = vxor.u32 %v1222, 2147483648
  %v1233 = vsel %vm1231, %v1232, %v1223
  %v1234 = vsel %vm1227, %v1230, %v1233
  %v1235 = vsel %vm1224, nan, %v1234
  %v1236 = vand.u32 2147483647, %v815
  %vm1237 = vcmp.le.f32.partialorder %v1236, 0.7853982
  %vm1238 = vcmp.lt.s32.totalorder %v815, 0
  %v1239 = vand.u32 %v815, 2139095040
  %v1240 = vshrl.u32 %v1239, 23
  %v1241 = vsub.s32 %v1240, 127
  %v1242 = vand.u32 2147483647, %v815
  %v1243 = vand.u32 %v1242, 8388607
  %v1244 = vor.u32 %v1243, 8388608
  %v1245 = vsub.s32 0, %v1244
  %v1246 = vadd.s32 %v1241, 1
  %vm1247 = vcmp.gt.s32.totalorder %v1246, 0
  %v1248 = vsel %vm1247, %v1246, 0
  %v1249 = vshrl.u32 %v1248, 5
  %v1250 = vand.u32 %v1248, 31
  %v1251 = vsub.s32 32, %v1250
  %v1252 = vshrl.u32 683565275, %v1251
  %v1253 = vshll.u32 683565275, %v1250
  %v1254 = vshrl.u32 2475754826, %v1251
  %v1255 = vor.u32 %v1253, %v1254
  %v1256 = vshll.u32 2475754826, %v1250
  %v1257 = vshrl.u32 2131351028, %v1251
  %v1258 = vor.u32 %v1256, %v1257
  %v1259 = vshll.u32 2131351028, %v1250
  %v1260 = vshrl.u32 2102212464, %v1251
  %v1261 = vor.u32 %v1259, %v1260
  %v1262 = vshll.u32 2102212464, %v1250
  %v1263 = vshrl.u32 920167782, %v1251
  %v1264 = vor.u32 %v1262, %v1263
  %v1265 = vshll.u32 920167782, %v1250
  %v1266 = vshrl.u32 1326507024, %v1251
  %v1267 = vor.u32 %v1265, %v1266
  %vm1268 = vcmp.lt.s32.totalorder %v1249, 1
  %vm1269 = vcmp.lt.s32.totalorder %v1249, 2
  %vm1270 = vcmp.lt.s32.totalorder %v1249, 3
  %vm1271 = vcmp.lt.s32.totalorder %v1249, 4
  %v1272 = vsel %vm1268, %v1252, %v1255
  %v1273 = vsel %vm1271, %v1261, 2102212464
  %v1274 = vsel %vm1270, %v1258, %v1273
  %v1275 = vsel %vm1269, %v1272, %v1274
  %v1276 = vsel %vm1268, %v1255, %v1258
  %v1277 = vsel %vm1271, %v1264, 920167782
  %v1278 = vsel %vm1270, %v1261, %v1277
  %v1279 = vsel %vm1269, %v1276, %v1278
  %v1280 = vsel %vm1268, %v1258, %v1261
  %v1281 = vsel %vm1271, %v1267, 1326507024
  %v1282 = vsel %vm1270, %v1264, %v1281
  %v1283 = vsel %vm1269, %v1280, %v1282
  %v1284 = vshll.u32 %v1244, 8
  %v1285 = vmul.u32.u64.compose %v1284, %v1283
  %v1286 = vextract.low.u32 %v1285
  %v1287 = vextract.high.u32 %v1285
  %v1288 = vmul.u32.u64.compose %v1284, %v1279
  %v1289 = vextract.low.u32 %v1288
  %v1290 = vextract.high.u32 %v1288
  %v1291 = vmul.u32 %v1284, %v1275
  %v1292 = vadd.s32 %v1287, %v1289
  %vm1293 = vc.u32 %v1287, %v1289
  %v1294 = vadd.s32 %v1290, 1
  %v1295 = vsel %vm1293, %v1294, %v1290
  %v1296 = vadd.s32 %v1291, %v1295
  %v1297 = vadd.s32 %v1296, 536870912
  %v1298 = vshrl.u32 %v1297, 30
  %v1299 = vshll.u32 %v1298, 30
  %v1300 = vsub.s32 %v1296, %v1299
  %vm1301 = vcmp.lt.s32.totalorder %v1300, 0
  %v1302 = vsub.s32 0, %v1300
  %v1303 = vsel %vm1301, %v1302, %v1300
  %v1304 = vclz %v1303
  %v1305 = vsub.s32 %v1304, 2
  %vm1306 = vcmp.gt.s32.totalorder 0, %v1305
  %v1307 = vsel %vm1306, 0, %v1305
  %v1308 = vsub.s32 32, %v1307
  %v1309 = vshll.u32 %v1300, %v1307
  %v1310 = vshrl.u32 %v1292, %v1308
  %v1311 = vor.u32 %v1309, %v1310
  %v1312 = vsub.s32 4294967266, %v1307
  %v1313 = vadd.s32 %v1312, 127
  %v1314 = vshll.u32 %v1313, 23
  %v1315 = vor.u32 4788187, %v1314
  %v1316 = vand.u32 2147483647, %v1315
  %v1318 = vcvt.s32.f32 %v1311
  %v1319 = vmul.f32 %v1318, %v1316
  %v1320 = vxor.u32 %v1319, 2147483648
  %v1321 = vsel %vm1238, %v1320, %v1319
  %v1322 = vsub.s32 4, %v1298
  %v1323 = vsel %vm1238, %v1322, %v1298
  %v1324 = vsel %vm1237, %v815, %v1321
  %v1325 = vsel %vm1237, 0, %v1323
  %v1326 = vcosq.f32.pop %v1324
  %v1327 = vsinq.f32.pop %v1324
  %vm1328 = vweird.f32 %v815
  %v1329 = vadd.s32 %v1325, 3
  %v1330 = vand.u32 %v1329, 3
  %vm1331 = vcmp.lt.s32.totalorder %v1330, 2
  %vm1332 = vcmp.eq.s32.totalorder %v1330, 0
  %v1333 = vxor.u32 %v1327, 2147483648
  %v1334 = vsel %vm1332, %v1326, %v1333
  %vm1335 = vcmp.eq.s32.totalorder %v1330, 2
  %v1336 = vxor.u32 %v1326, 2147483648
  %v1337 = vsel %vm1335, %v1336, %v1327
  %v1338 = vsel %vm1331, %v1334, %v1337
  %v1339 = vsel %vm1328, nan, %v1338
  %v1340 = vand.u32 2147483647, %v816
  %vm1341 = vcmp.le.f32.partialorder %v1340, 0.7853982
  %vm1342 = vcmp.lt.s32.totalorder %v816, 0
  %v1343 = vand.u32 %v816, 2139095040
  %v1344 = vshrl.u32 %v1343, 23
  %v1345 = vsub.s32 %v1344, 127
  %v1346 = vand.u32 2147483647, %v816
  %v1347 = vand.u32 %v1346, 8388607
  %v1348 = vor.u32 %v1347, 8388608
  %v1349 = vsub.s32 0, %v1348
  %v1350 = vadd.s32 %v1345, 1
  %vm1351 = vcmp.gt.s32.totalorder %v1350, 0
  %v1352 = vsel %vm1351, %v1350, 0
  %v1353 = vshrl.u32 %v1352, 5
  %v1354 = vand.u32 %v1352, 31
  %v1355 = vsub.s32 32, %v1354
  %v1356 = vshrl.u32 683565275, %v1355
  %v1357 = vshll.u32 683565275, %v1354
  %v1358 = vshrl.u32 2475754826, %v1355
  %v1359 = vor.u32 %v1357, %v1358
  %v1360 = vshll.u32 2475754826, %v1354
  %v1361 = vshrl.u32 2131351028, %v1355
  %v1362 = vor.u32 %v1360, %v1361
  %v1363 = vshll.u32 2131351028, %v1354
  %v1364 = vshrl.u32 2102212464, %v1355
  %v1365 = vor.u32 %v1363, %v1364
  %v1366 = vshll.u32 2102212464, %v1354
  %v1367 = vshrl.u32 920167782, %v1355
  %v1368 = vor.u32 %v1366, %v1367
  %v1369 = vshll.u32 920167782, %v1354
  %v1370 = vshrl.u32 1326507024, %v1355
  %v1371 = vor.u32 %v1369, %v1370
  %vm1372 = vcmp.lt.s32.totalorder %v1353, 1
  %vm1373 = vcmp.lt.s32.totalorder %v1353, 2
  %vm1374 = vcmp.lt.s32.totalorder %v1353, 3
  %vm1375 = vcmp.lt.s32.totalorder %v1353, 4
  %v1376 = vsel %vm1372, %v1356, %v1359
  %v1377 = vsel %vm1375, %v1365, 2102212464
  %v1378 = vsel %vm1374, %v1362, %v1377
  %v1379 = vsel %vm1373, %v1376, %v1378
  %v1380 = vsel %vm1372, %v1359, %v1362
  %v1381 = vsel %vm1375, %v1368, 920167782
  %v1382 = vsel %vm1374, %v1365, %v1381
  %v1383 = vsel %vm1373, %v1380, %v1382
  %v1384 = vsel %vm1372, %v1362, %v1365
  %v1385 = vsel %vm1375, %v1371, 1326507024
  %v1386 = vsel %vm1374, %v1368, %v1385
  %v1387 = vsel %vm1373, %v1384, %v1386
  %v1388 = vshll.u32 %v1348, 8
  %v1389 = vmul.u32.u64.compose %v1388, %v1387
  %v1390 = vextract.low.u32 %v1389
  %v1391 = vextract.high.u32 %v1389
  %v1392 = vmul.u32.u64.compose %v1388, %v1383
  %v1393 = vextract.low.u32 %v1392
  %v1394 = vextract.high.u32 %v1392
  %v1395 = vmul.u32 %v1388, %v1379
  %v1396 = vadd.s32 %v1391, %v1393
  %vm1397 = vc.u32 %v1391, %v1393
  %v1398 = vadd.s32 %v1394, 1
  %v1399 = vsel %vm1397, %v1398, %v1394
  %v1400 = vadd.s32 %v1395, %v1399
  %v1401 = vadd.s32 %v1400, 536870912
  %v1402 = vshrl.u32 %v1401, 30
  %v1403 = vshll.u32 %v1402, 30
  %v1404 = vsub.s32 %v1400, %v1403
  %vm1405 = vcmp.lt.s32.totalorder %v1404, 0
  %v1406 = vsub.s32 0, %v1404
  %v1407 = vsel %vm1405, %v1406, %v1404
  %v1408 = vclz %v1407
  %v1409 = vsub.s32 %v1408, 2
  %vm1410 = vcmp.gt.s32.totalorder 0, %v1409
  %v1411 = vsel %vm1410, 0, %v1409
  %v1412 = vsub.s32 32, %v1411
  %v1413 = vshll.u32 %v1404, %v1411
  %v1414 = vshrl.u32 %v1396, %v1412
  %v1415 = vor.u32 %v1413, %v1414
  %v1416 = vsub.s32 4294967266, %v1411
  %v1417 = vadd.s32 %v1416, 127
  %v1418 = vshll.u32 %v1417, 23
  %v1419 = vor.u32 4788187, %v1418
  %v1420 = vand.u32 2147483647, %v1419
  %v1422 = vcvt.s32.f32 %v1415
  %v1423 = vmul.f32 %v1422, %v1420
  %v1424 = vxor.u32 %v1423, 2147483648
  %v1425 = vsel %vm1342, %v1424, %v1423
  %v1426 = vsub.s32 4, %v1402
  %v1427 = vsel %vm1342, %v1426, %v1402
  %v1428 = vsel %vm1341, %v816, %v1425
  %v1429 = vsel %vm1341, 0, %v1427
  %v1430 = vcosq.f32.pop %v1428
  %v1431 = vsinq.f32.pop %v1428
  %vm1432 = vweird.f32 %v816
  %v1433 = vadd.s32 %v1429, 3
  %v1434 = vand.u32 %v1433, 3
  %vm1435 = vcmp.lt.s32.totalorder %v1434, 2
  %vm1436 = vcmp.eq.s32.totalorder %v1434, 0
  %v1437 = vxor.u32 %v1431, 2147483648
  %v1438 = vsel %vm1436, %v1430, %v1437
  %vm1439 = vcmp.eq.s32.totalorder %v1434, 2
  %v1440 = vxor.u32 %v1430, 2147483648
  %v1441 = vsel %vm1439, %v1440, %v1431
  %v1442 = vsel %vm1435, %v1438, %v1441
  %v1443 = vsel %vm1432, nan, %v1442
  %v1444 = vand.u32 2147483647, %v817
  %vm1445 = vcmp.le.f32.partialorder %v1444, 0.7853982
  %vm1446 = vcmp.lt.s32.totalorder %v817, 0
  %v1447 = vand.u32 %v817, 2139095040
  %v1448 = vshrl.u32 %v1447, 23
  %v1449 = vsub.s32 %v1448, 127
  %v1450 = vand.u32 2147483647, %v817
  %v1451 = vand.u32 %v1450, 8388607
  %v1452 = vor.u32 %v1451, 8388608
  %v1453 = vsub.s32 0, %v1452
  %v1454 = vadd.s32 %v1449, 1
  %vm1455 = vcmp.gt.s32.totalorder %v1454, 0
  %v1456 = vsel %vm1455, %v1454, 0
  %v1457 = vshrl.u32 %v1456, 5
  %v1458 = vand.u32 %v1456, 31
  %v1459 = vsub.s32 32, %v1458
  %v1460 = vshrl.u32 683565275, %v1459
  %v1461 = vshll.u32 683565275, %v1458
  %v1462 = vshrl.u32 2475754826, %v1459
  %v1463 = vor.u32 %v1461, %v1462
  %v1464 = vshll.u32 2475754826, %v1458
  %v1465 = vshrl.u32 2131351028, %v1459
  %v1466 = vor.u32 %v1464, %v1465
  %v1467 = vshll.u32 2131351028, %v1458
  %v1468 = vshrl.u32 2102212464, %v1459
  %v1469 = vor.u32 %v1467, %v1468
  %v1470 = vshll.u32 2102212464, %v1458
  %v1471 = vshrl.u32 920167782, %v1459
  %v1472 = vor.u32 %v1470, %v1471
  %v1473 = vshll.u32 920167782, %v1458
  %v1474 = vshrl.u32 1326507024, %v1459
  %v1475 = vor.u32 %v1473, %v1474
  %vm1476 = vcmp.lt.s32.totalorder %v1457, 1
  %vm1477 = vcmp.lt.s32.totalorder %v1457, 2
  %vm1478 = vcmp.lt.s32.totalorder %v1457, 3
  %vm1479 = vcmp.lt.s32.totalorder %v1457, 4
  %v1480 = vsel %vm1476, %v1460, %v1463
  %v1481 = vsel %vm1479, %v1469, 2102212464
  %v1482 = vsel %vm1478, %v1466, %v1481
  %v1483 = vsel %vm1477, %v1480, %v1482
  %v1484 = vsel %vm1476, %v1463, %v1466
  %v1485 = vsel %vm1479, %v1472, 920167782
  %v1486 = vsel %vm1478, %v1469, %v1485
  %v1487 = vsel %vm1477, %v1484, %v1486
  %v1488 = vsel %vm1476, %v1466, %v1469
  %v1489 = vsel %vm1479, %v1475, 1326507024
  %v1490 = vsel %vm1478, %v1472, %v1489
  %v1491 = vsel %vm1477, %v1488, %v1490
  %v1492 = vshll.u32 %v1452, 8
  %v1493 = vmul.u32.u64.compose %v1492, %v1491
  %v1494 = vextract.low.u32 %v1493
  %v1495 = vextract.high.u32 %v1493
  %v1496 = vmul.u32.u64.compose %v1492, %v1487
  %v1497 = vextract.low.u32 %v1496
  %v1498 = vextract.high.u32 %v1496
  %v1499 = vmul.u32 %v1492, %v1483
  %v1500 = vadd.s32 %v1495, %v1497
  %vm1501 = vc.u32 %v1495, %v1497
  %v1502 = vadd.s32 %v1498, 1
  %v1503 = vsel %vm1501, %v1502, %v1498
  %v1504 = vadd.s32 %v1499, %v1503
  %v1505 = vadd.s32 %v1504, 536870912
  %v1506 = vshrl.u32 %v1505, 30
  %v1507 = vshll.u32 %v1506, 30
  %v1508 = vsub.s32 %v1504, %v1507
  %vm1509 = vcmp.lt.s32.totalorder %v1508, 0
  %v1510 = vsub.s32 0, %v1508
  %v1511 = vsel %vm1509, %v1510, %v1508
  %v1512 = vclz %v1511
  %v1513 = vsub.s32 %v1512, 2
  %vm1514 = vcmp.gt.s32.totalorder 0, %v1513
  %v1515 = vsel %vm1514, 0, %v1513
  %v1516 = vsub.s32 32, %v1515
  %v1517 = vshll.u32 %v1508, %v1515
  %v1518 = vshrl.u32 %v1500, %v1516
  %v1519 = vor.u32 %v1517, %v1518
  %v1520 = vsub.s32 4294967266, %v1515
  %v1521 = vadd.s32 %v1520, 127
  %v1522 = vshll.u32 %v1521, 23
  %v1523 = vor.u32 4788187, %v1522
  %v1524 = vand.u32 2147483647, %v1523
  %v1526 = vcvt.s32.f32 %v1519
  %v1527 = vmul.f32 %v1526, %v1524
  %v1528 = vxor.u32 %v1527, 2147483648
  %v1529 = vsel %vm1446, %v1528, %v1527
  %v1530 = vsub.s32 4, %v1506
  %v1531 = vsel %vm1446, %v1530, %v1506
  %v1532 = vsel %vm1445, %v817, %v1529
  %v1533 = vsel %vm1445, 0, %v1531
  %v1534 = vcosq.f32.pop %v1532
  %v1535 = vsinq.f32.pop %v1532
  %vm1536 = vweird.f32 %v817
  %v1537 = vadd.s32 %v1533, 3
  %v1538 = vand.u32 %v1537, 3
  %vm1539 = vcmp.lt.s32.totalorder %v1538, 2
  %vm1540 = vcmp.eq.s32.totalorder %v1538, 0
  %v1541 = vxor.u32 %v1535, 2147483648
  %v1542 = vsel %vm1540, %v1534, %v1541
  %vm1543 = vcmp.eq.s32.totalorder %v1538, 2
  %v1544 = vxor.u32 %v1534, 2147483648
  %v1545 = vsel %vm1543, %v1544, %v1535
  %v1546 = vsel %vm1539, %v1542, %v1545
  %v1547 = vsel %vm1536, nan, %v1546
  %v1548 = vand.u32 2147483647, %v818
  %vm1549 = vcmp.le.f32.partialorder %v1548, 0.7853982
  %vm1550 = vcmp.lt.s32.totalorder %v818, 0
  %v1551 = vand.u32 %v818, 2139095040
  %v1552 = vshrl.u32 %v1551, 23
  %v1553 = vsub.s32 %v1552, 127
  %v1554 = vand.u32 2147483647, %v818
  %v1555 = vand.u32 %v1554, 8388607
  %v1556 = vor.u32 %v1555, 8388608
  %v1557 = vsub.s32 0, %v1556
  %v1558 = vadd.s32 %v1553, 1
  %vm1559 = vcmp.gt.s32.totalorder %v1558, 0
  %v1560 = vsel %vm1559, %v1558, 0
  %v1561 = vshrl.u32 %v1560, 5
  %v1562 = vand.u32 %v1560, 31
  %v1563 = vsub.s32 32, %v1562
  %v1564 = vshrl.u32 683565275, %v1563
  %v1565 = vshll.u32 683565275, %v1562
  %v1566 = vshrl.u32 2475754826, %v1563
  %v1567 = vor.u32 %v1565, %v1566
  %v1568 = vshll.u32 2475754826, %v1562
  %v1569 = vshrl.u32 2131351028, %v1563
  %v1570 = vor.u32 %v1568, %v1569
  %v1571 = vshll.u32 2131351028, %v1562
  %v1572 = vshrl.u32 2102212464, %v1563
  %v1573 = vor.u32 %v1571, %v1572
  %v1574 = vshll.u32 2102212464, %v1562
  %v1575 = vshrl.u32 920167782, %v1563
  %v1576 = vor.u32 %v1574, %v1575
  %v1577 = vshll.u32 920167782, %v1562
  %v1578 = vshrl.u32 1326507024, %v1563
  %v1579 = vor.u32 %v1577, %v1578
  %vm1580 = vcmp.lt.s32.totalorder %v1561, 1
  %vm1581 = vcmp.lt.s32.totalorder %v1561, 2
  %vm1582 = vcmp.lt.s32.totalorder %v1561, 3
  %vm1583 = vcmp.lt.s32.totalorder %v1561, 4
  %v1584 = vsel %vm1580, %v1564, %v1567
  %v1585 = vsel %vm1583, %v1573, 2102212464
  %v1586 = vsel %vm1582, %v1570, %v1585
  %v1587 = vsel %vm1581, %v1584, %v1586
  %v1588 = vsel %vm1580, %v1567, %v1570
  %v1589 = vsel %vm1583, %v1576, 920167782
  %v1590 = vsel %vm1582, %v1573, %v1589
  %v1591 = vsel %vm1581, %v1588, %v1590
  %v1592 = vsel %vm1580, %v1570, %v1573
  %v1593 = vsel %vm1583, %v1579, 1326507024
  %v1594 = vsel %vm1582, %v1576, %v1593
  %v1595 = vsel %vm1581, %v1592, %v1594
  %v1596 = vshll.u32 %v1556, 8
  %v1597 = vmul.u32.u64.compose %v1596, %v1595
  %v1598 = vextract.low.u32 %v1597
  %v1599 = vextract.high.u32 %v1597
  %v1600 = vmul.u32.u64.compose %v1596, %v1591
  %v1601 = vextract.low.u32 %v1600
  %v1602 = vextract.high.u32 %v1600
  %v1603 = vmul.u32 %v1596, %v1587
  %v1604 = vadd.s32 %v1599, %v1601
  %vm1605 = vc.u32 %v1599, %v1601
  %v1606 = vadd.s32 %v1602, 1
  %v1607 = vsel %vm1605, %v1606, %v1602
  %v1608 = vadd.s32 %v1603, %v1607
  %v1609 = vadd.s32 %v1608, 536870912
  %v1610 = vshrl.u32 %v1609, 30
  %v1611 = vshll.u32 %v1610, 30
  %v1612 = vsub.s32 %v1608, %v1611
  %vm1613 = vcmp.lt.s32.totalorder %v1612, 0
  %v1614 = vsub.s32 0, %v1612
  %v1615 = vsel %vm1613, %v1614, %v1612
  %v1616 = vclz %v1615
  %v1617 = vsub.s32 %v1616, 2
  %vm1618 = vcmp.gt.s32.totalorder 0, %v1617
  %v1619 = vsel %vm1618, 0, %v1617
  %v1620 = vsub.s32 32, %v1619
  %v1621 = vshll.u32 %v1612, %v1619
  %v1622 = vshrl.u32 %v1604, %v1620
  %v1623 = vor.u32 %v1621, %v1622
  %v1624 = vsub.s32 4294967266, %v1619
  %v1625 = vadd.s32 %v1624, 127
  %v1626 = vshll.u32 %v1625, 23
  %v1627 = vor.u32 4788187, %v1626
  %v1628 = vand.u32 2147483647, %v1627
  %v1630 = vcvt.s32.f32 %v1623
  %v1631 = vmul.f32 %v1630, %v1628
  %v1632 = vxor.u32 %v1631, 2147483648
  %v1633 = vsel %vm1550, %v1632, %v1631
  %v1634 = vsub.s32 4, %v1610
  %v1635 = vsel %vm1550, %v1634, %v1610
  %v1636 = vsel %vm1549, %v818, %v1633
  %v1637 = vsel %vm1549, 0, %v1635
  %v1638 = vcosq.f32.pop %v1636
  %v1639 = vsinq.f32.pop %v1636
  %vm1640 = vweird.f32 %v818
  %v1641 = vadd.s32 %v1637, 3
  %v1642 = vand.u32 %v1641, 3
  %vm1643 = vcmp.lt.s32.totalorder %v1642, 2
  %vm1644 = vcmp.eq.s32.totalorder %v1642, 0
  %v1645 = vxor.u32 %v1639, 2147483648
  %v1646 = vsel %vm1644, %v1638, %v1645
  %vm1647 = vcmp.eq.s32.totalorder %v1642, 2
  %v1648 = vxor.u32 %v1638, 2147483648
  %v1649 = vsel %vm1647, %v1648, %v1639
  %v1650 = vsel %vm1643, %v1646, %v1649
  %v1651 = vsel %vm1640, nan, %v1650
  %v1652 = vand.u32 2147483647, %v819
  %vm1653 = vcmp.le.f32.partialorder %v1652, 0.7853982
  %vm1654 = vcmp.lt.s32.totalorder %v819, 0
  %v1655 = vand.u32 %v819, 2139095040
  %v1656 = vshrl.u32 %v1655, 23
  %v1657 = vsub.s32 %v1656, 127
  %v1658 = vand.u32 2147483647, %v819
  %v1659 = vand.u32 %v1658, 8388607
  %v1660 = vor.u32 %v1659, 8388608
  %v1661 = vsub.s32 0, %v1660
  %v1662 = vadd.s32 %v1657, 1
  %vm1663 = vcmp.gt.s32.totalorder %v1662, 0
  %v1664 = vsel %vm1663, %v1662, 0
  %v1665 = vshrl.u32 %v1664, 5
  %v1666 = vand.u32 %v1664, 31
  %v1667 = vsub.s32 32, %v1666
  %v1668 = vshrl.u32 683565275, %v1667
  %v1669 = vshll.u32 683565275, %v1666
  %v1670 = vshrl.u32 2475754826, %v1667
  %v1671 = vor.u32 %v1669, %v1670
  %v1672 = vshll.u32 2475754826, %v1666
  %v1673 = vshrl.u32 2131351028, %v1667
  %v1674 = vor.u32 %v1672, %v1673
  %v1675 = vshll.u32 2131351028, %v1666
  %v1676 = vshrl.u32 2102212464, %v1667
  %v1677 = vor.u32 %v1675, %v1676
  %v1678 = vshll.u32 2102212464, %v1666
  %v1679 = vshrl.u32 920167782, %v1667
  %v1680 = vor.u32 %v1678, %v1679
  %v1681 = vshll.u32 920167782, %v1666
  %v1682 = vshrl.u32 1326507024, %v1667
  %v1683 = vor.u32 %v1681, %v1682
  %vm1684 = vcmp.lt.s32.totalorder %v1665, 1
  %vm1685 = vcmp.lt.s32.totalorder %v1665, 2
  %vm1686 = vcmp.lt.s32.totalorder %v1665, 3
  %vm1687 = vcmp.lt.s32.totalorder %v1665, 4
  %v1688 = vsel %vm1684, %v1668, %v1671
  %v1689 = vsel %vm1687, %v1677, 2102212464
  %v1690 = vsel %vm1686, %v1674, %v1689
  %v1691 = vsel %vm1685, %v1688, %v1690
  %v1692 = vsel %vm1684, %v1671, %v1674
  %v1693 = vsel %vm1687, %v1680, 920167782
  %v1694 = vsel %vm1686, %v1677, %v1693
  %v1695 = vsel %vm1685, %v1692, %v1694
  %v1696 = vsel %vm1684, %v1674, %v1677
  %v1697 = vsel %vm1687, %v1683, 1326507024
  %v1698 = vsel %vm1686, %v1680, %v1697
  %v1699 = vsel %vm1685, %v1696, %v1698
  %v1700 = vshll.u32 %v1660, 8
  %v1701 = vmul.u32.u64.compose %v1700, %v1699
  %v1702 = vextract.low.u32 %v1701
  %v1703 = vextract.high.u32 %v1701
  %v1704 = vmul.u32.u64.compose %v1700, %v1695
  %v1705 = vextract.low.u32 %v1704
  %v1706 = vextract.high.u32 %v1704
  %v1707 = vmul.u32 %v1700, %v1691
  %v1708 = vadd.s32 %v1703, %v1705
  %vm1709 = vc.u32 %v1703, %v1705
  %v1710 = vadd.s32 %v1706, 1
  %v1711 = vsel %vm1709, %v1710, %v1706
  %v1712 = vadd.s32 %v1707, %v1711
  %v1713 = vadd.s32 %v1712, 536870912
  %v1714 = vshrl.u32 %v1713, 30
  %v1715 = vshll.u32 %v1714, 30
  %v1716 = vsub.s32 %v1712, %v1715
  %vm1717 = vcmp.lt.s32.totalorder %v1716, 0
  %v1718 = vsub.s32 0, %v1716
  %v1719 = vsel %vm1717, %v1718, %v1716
  %v1720 = vclz %v1719
  %v1721 = vsub.s32 %v1720, 2
  %vm1722 = vcmp.gt.s32.totalorder 0, %v1721
  %v1723 = vsel %vm1722, 0, %v1721
  %v1724 = vsub.s32 32, %v1723
  %v1725 = vshll.u32 %v1716, %v1723
  %v1726 = vshrl.u32 %v1708, %v1724
  %v1727 = vor.u32 %v1725, %v1726
  %v1728 = vsub.s32 4294967266, %v1723
  %v1729 = vadd.s32 %v1728, 127
  %v1730 = vshll.u32 %v1729, 23
  %v1731 = vor.u32 4788187, %v1730
  %v1732 = vand.u32 2147483647, %v1731
  %v1734 = vcvt.s32.f32 %v1727
  %v1735 = vmul.f32 %v1734, %v1732
  %v1736 = vxor.u32 %v1735, 2147483648
  %v1737 = vsel %vm1654, %v1736, %v1735
  %v1738 = vsub.s32 4, %v1714
  %v1739 = vsel %vm1654, %v1738, %v1714
  %v1740 = vsel %vm1653, %v819, %v1737
  %v1741 = vsel %vm1653, 0, %v1739
  %v1742 = vcosq.f32.pop %v1740
  %v1743 = vsinq.f32.pop %v1740
  %vm1744 = vweird.f32 %v819
  %v1745 = vadd.s32 %v1741, 3
  %v1746 = vand.u32 %v1745, 3
  %vm1747 = vcmp.lt.s32.totalorder %v1746, 2
  %vm1748 = vcmp.eq.s32.totalorder %v1746, 0
  %v1749 = vxor.u32 %v1743, 2147483648
  %v1750 = vsel %vm1748, %v1742, %v1749
  %vm1751 = vcmp.eq.s32.totalorder %v1746, 2
  %v1752 = vxor.u32 %v1742, 2147483648
  %v1753 = vsel %vm1751, %v1752, %v1743
  %v1754 = vsel %vm1747, %v1750, %v1753
  %v1755 = vsel %vm1744, nan, %v1754
  %v1756 = vand.u32 2147483647, %v811
  %vm1757 = vcmp.le.f32.partialorder %v1756, 0.7853982
  %vm1758 = vcmp.lt.s32.totalorder %v811, 0
  %v1759 = vand.u32 %v811, 2139095040
  %v1760 = vshrl.u32 %v1759, 23
  %v1761 = vsub.s32 %v1760, 127
  %v1762 = vand.u32 2147483647, %v811
  %v1763 = vand.u32 %v1762, 8388607
  %v1764 = vor.u32 %v1763, 8388608
  %v1765 = vsub.s32 0, %v1764
  %v1766 = vadd.s32 %v1761, 1
  %vm1767 = vcmp.gt.s32.totalorder %v1766, 0
  %v1768 = vsel %vm1767, %v1766, 0
  %v1769 = vshrl.u32 %v1768, 5
  %v1770 = vand.u32 %v1768, 31
  %v1771 = vsub.s32 32, %v1770
  %v1772 = vshrl.u32 683565275, %v1771
  %v1773 = vshll.u32 683565275, %v1770
  %v1774 = vshrl.u32 2475754826, %v1771
  %v1775 = vor.u32 %v1773, %v1774
  %v1776 = vshll.u32 2475754826, %v1770
  %v1777 = vshrl.u32 2131351028, %v1771
  %v1778 = vor.u32 %v1776, %v1777
  %v1779 = vshll.u32 2131351028, %v1770
  %v1780 = vshrl.u32 2102212464, %v1771
  %v1781 = vor.u32 %v1779, %v1780
  %v1782 = vshll.u32 2102212464, %v1770
  %v1783 = vshrl.u32 920167782, %v1771
  %v1784 = vor.u32 %v1782, %v1783
  %v1785 = vshll.u32 920167782, %v1770
  %v1786 = vshrl.u32 1326507024, %v1771
  %v1787 = vor.u32 %v1785, %v1786
  %vm1788 = vcmp.lt.s32.totalorder %v1769, 1
  %vm1789 = vcmp.lt.s32.totalorder %v1769, 2
  %vm1790 = vcmp.lt.s32.totalorder %v1769, 3
  %vm1791 = vcmp.lt.s32.totalorder %v1769, 4
  %v1792 = vsel %vm1788, %v1772, %v1775
  %v1793 = vsel %vm1791, %v1781, 2102212464
  %v1794 = vsel %vm1790, %v1778, %v1793
  %v1795 = vsel %vm1789, %v1792, %v1794
  %v1796 = vsel %vm1788, %v1775, %v1778
  %v1797 = vsel %vm1791, %v1784, 920167782
  %v1798 = vsel %vm1790, %v1781, %v1797
  %v1799 = vsel %vm1789, %v1796, %v1798
  %v1800 = vsel %vm1788, %v1778, %v1781
  %v1801 = vsel %vm1791, %v1787, 1326507024
  %v1802 = vsel %vm1790, %v1784, %v1801
  %v1803 = vsel %vm1789, %v1800, %v1802
  %v1804 = vshll.u32 %v1764, 8
  %v1805 = vmul.u32.u64.compose %v1804, %v1803
  %v1806 = vextract.low.u32 %v1805
  %v1807 = vextract.high.u32 %v1805
  %v1808 = vmul.u32.u64.compose %v1804, %v1799
  %v1809 = vextract.low.u32 %v1808
  %v1810 = vextract.high.u32 %v1808
  %v1811 = vmul.u32 %v1804, %v1795
  %v1812 = vadd.s32 %v1807, %v1809
  %vm1813 = vc.u32 %v1807, %v1809
  %v1814 = vadd.s32 %v1810, 1
  %v1815 = vsel %vm1813, %v1814, %v1810
  %v1816 = vadd.s32 %v1811, %v1815
  %v1817 = vadd.s32 %v1816, 536870912
  %v1818 = vshrl.u32 %v1817, 30
  %v1819 = vshll.u32 %v1818, 30
  %v1820 = vsub.s32 %v1816, %v1819
  %vm1821 = vcmp.lt.s32.totalorder %v1820, 0
  %v1822 = vsub.s32 0, %v1820
  %v1823 = vsel %vm1821, %v1822, %v1820
  %v1824 = vclz %v1823
  %v1825 = vsub.s32 %v1824, 2
  %vm1826 = vcmp.gt.s32.totalorder 0, %v1825
  %v1827 = vsel %vm1826, 0, %v1825
  %v1828 = vsub.s32 32, %v1827
  %v1829 = vshll.u32 %v1820, %v1827
  %v1830 = vshrl.u32 %v1812, %v1828
  %v1831 = vor.u32 %v1829, %v1830
  %v1832 = vsub.s32 4294967266, %v1827
  %v1833 = vadd.s32 %v1832, 127
  %v1834 = vshll.u32 %v1833, 23
  %v1835 = vor.u32 4788187, %v1834
  %v1836 = vand.u32 2147483647, %v1835
  %v1838 = vcvt.s32.f32 %v1831
  %v1839 = vmul.f32 %v1838, %v1836
  %v1840 = vxor.u32 %v1839, 2147483648
  %v1841 = vsel %vm1758, %v1840, %v1839
  %v1842 = vsub.s32 4, %v1818
  %v1843 = vsel %vm1758, %v1842, %v1818
  %v1844 = vsel %vm1757, %v811, %v1841
  %v1845 = vsel %vm1757, 0, %v1843
  %v1846 = vcosq.f32.pop %v1844
  %v1847 = vsinq.f32.pop %v1844
  %vm1848 = vweird.f32 %v811
  %v1849 = vand.u32 %v1845, 3
  %vm1850 = vcmp.lt.s32.totalorder %v1849, 2
  %vm1851 = vcmp.eq.s32.totalorder %v1849, 0
  %v1852 = vxor.u32 %v1847, 2147483648
  %v1853 = vsel %vm1851, %v1846, %v1852
  %vm1854 = vcmp.eq.s32.totalorder %v1849, 2
  %v1855 = vxor.u32 %v1846, 2147483648
  %v1856 = vsel %vm1854, %v1855, %v1847
  %v1857 = vsel %vm1850, %v1853, %v1856
  %v1858 = vsel %vm1848, nan, %v1857
  %v1859 = vand.u32 2147483647, %v812
  %vm1860 = vcmp.le.f32.partialorder %v1859, 0.7853982
  %vm1861 = vcmp.lt.s32.totalorder %v812, 0
  %v1862 = vand.u32 %v812, 2139095040
  %v1863 = vshrl.u32 %v1862, 23
  %v1864 = vsub.s32 %v1863, 127
  %v1865 = vand.u32 2147483647, %v812
  %v1866 = vand.u32 %v1865, 8388607
  %v1867 = vor.u32 %v1866, 8388608
  %v1868 = vsub.s32 0, %v1867
  %v1869 = vadd.s32 %v1864, 1
  %vm1870 = vcmp.gt.s32.totalorder %v1869, 0
  %v1871 = vsel %vm1870, %v1869, 0
  %v1872 = vshrl.u32 %v1871, 5
  %v1873 = vand.u32 %v1871, 31
  %v1874 = vsub.s32 32, %v1873
  %v1875 = vshrl.u32 683565275, %v1874
  %v1876 = vshll.u32 683565275, %v1873
  %v1877 = vshrl.u32 2475754826, %v1874
  %v1878 = vor.u32 %v1876, %v1877
  %v1879 = vshll.u32 2475754826, %v1873
  %v1880 = vshrl.u32 2131351028, %v1874
  %v1881 = vor.u32 %v1879, %v1880
  %v1882 = vshll.u32 2131351028, %v1873
  %v1883 = vshrl.u32 2102212464, %v1874
  %v1884 = vor.u32 %v1882, %v1883
  %v1885 = vshll.u32 2102212464, %v1873
  %v1886 = vshrl.u32 920167782, %v1874
  %v1887 = vor.u32 %v1885, %v1886
  %v1888 = vshll.u32 920167782, %v1873
  %v1889 = vshrl.u32 1326507024, %v1874
  %v1890 = vor.u32 %v1888, %v1889
  %vm1891 = vcmp.lt.s32.totalorder %v1872, 1
  %vm1892 = vcmp.lt.s32.totalorder %v1872, 2
  %vm1893 = vcmp.lt.s32.totalorder %v1872, 3
  %vm1894 = vcmp.lt.s32.totalorder %v1872, 4
  %v1895 = vsel %vm1891, %v1875, %v1878
  %v1896 = vsel %vm1894, %v1884, 2102212464
  %v1897 = vsel %vm1893, %v1881, %v1896
  %v1898 = vsel %vm1892, %v1895, %v1897
  %v1899 = vsel %vm1891, %v1878, %v1881
  %v1900 = vsel %vm1894, %v1887, 920167782
  %v1901 = vsel %vm1893, %v1884, %v1900
  %v1902 = vsel %vm1892, %v1899, %v1901
  %v1903 = vsel %vm1891, %v1881, %v1884
  %v1904 = vsel %vm1894, %v1890, 1326507024
  %v1905 = vsel %vm1893, %v1887, %v1904
  %v1906 = vsel %vm1892, %v1903, %v1905
  %v1907 = vshll.u32 %v1867, 8
  %v1908 = vmul.u32.u64.compose %v1907, %v1906
  %v1909 = vextract.low.u32 %v1908
  %v1910 = vextract.high.u32 %v1908
  %v1911 = vmul.u32.u64.compose %v1907, %v1902
  %v1912 = vextract.low.u32 %v1911
  %v1913 = vextract.high.u32 %v1911
  %v1914 = vmul.u32 %v1907, %v1898
  %v1915 = vadd.s32 %v1910, %v1912
  %vm1916 = vc.u32 %v1910, %v1912
  %v1917 = vadd.s32 %v1913, 1
  %v1918 = vsel %vm1916, %v1917, %v1913
  %v1919 = vadd.s32 %v1914, %v1918
  %v1920 = vadd.s32 %v1919, 536870912
  %v1921 = vshrl.u32 %v1920, 30
  %v1922 = vshll.u32 %v1921, 30
  %v1923 = vsub.s32 %v1919, %v1922
  %vm1924 = vcmp.lt.s32.totalorder %v1923, 0
  %v1925 = vsub.s32 0, %v1923
  %v1926 = vsel %vm1924, %v1925, %v1923
  %v1927 = vclz %v1926
  %v1928 = vsub.s32 %v1927, 2
  %vm1929 = vcmp.gt.s32.totalorder 0, %v1928
  %v1930 = vsel %vm1929, 0, %v1928
  %v1931 = vsub.s32 32, %v1930
  %v1932 = vshll.u32 %v1923, %v1930
  %v1933 = vshrl.u32 %v1915, %v1931
  %v1934 = vor.u32 %v1932, %v1933
  %v1935 = vsub.s32 4294967266, %v1930
  %v1936 = vadd.s32 %v1935, 127
  %v1937 = vshll.u32 %v1936, 23
  %v1938 = vor.u32 4788187, %v1937
  %v1939 = vand.u32 2147483647, %v1938
  %v1941 = vcvt.s32.f32 %v1934
  %v1942 = vmul.f32 %v1941, %v1939
  %v1943 = vxor.u32 %v1942, 2147483648
  %v1944 = vsel %vm1861, %v1943, %v1942
  %v1945 = vsub.s32 4, %v1921
  %v1946 = vsel %vm1861, %v1945, %v1921
  %v1947 = vsel %vm1860, %v812, %v1944
  %v1948 = vsel %vm1860, 0, %v1946
  %v1949 = vcosq.f32.pop %v1947
  %v1950 = vsinq.f32.pop %v1947
  %vm1951 = vweird.f32 %v812
  %v1952 = vand.u32 %v1948, 3
  %vm1953 = vcmp.lt.s32.totalorder %v1952, 2
  %vm1954 = vcmp.eq.s32.totalorder %v1952, 0
  %v1955 = vxor.u32 %v1950, 2147483648
  %v1956 = vsel %vm1954, %v1949, %v1955
  %vm1957 = vcmp.eq.s32.totalorder %v1952, 2
  %v1958 = vxor.u32 %v1949, 2147483648
  %v1959 = vsel %vm1957, %v1958, %v1950
  %v1960 = vsel %vm1953, %v1956, %v1959
  %v1961 = vsel %vm1951, nan, %v1960
  %v1962 = vand.u32 2147483647, %v813
  %vm1963 = vcmp.le.f32.partialorder %v1962, 0.7853982
  %vm1964 = vcmp.lt.s32.totalorder %v813, 0
  %v1965 = vand.u32 %v813, 2139095040
  %v1966 = vshrl.u32 %v1965, 23
  %v1967 = vsub.s32 %v1966, 127
  %v1968 = vand.u32 2147483647, %v813
  %v1969 = vand.u32 %v1968, 8388607
  %v1970 = vor.u32 %v1969, 8388608
  %v1971 = vsub.s32 0, %v1970
  %v1972 = vadd.s32 %v1967, 1
  %vm1973 = vcmp.gt.s32.totalorder %v1972, 0
  %v1974 = vsel %vm1973, %v1972, 0
  %v1975 = vshrl.u32 %v1974, 5
  %v1976 = vand.u32 %v1974, 31
  %v1977 = vsub.s32 32, %v1976
  %v1978 = vshrl.u32 683565275, %v1977
  %v1979 = vshll.u32 683565275, %v1976
  %v1980 = vshrl.u32 2475754826, %v1977
  %v1981 = vor.u32 %v1979, %v1980
  %v1982 = vshll.u32 2475754826, %v1976
  %v1983 = vshrl.u32 2131351028, %v1977
  %v1984 = vor.u32 %v1982, %v1983
  %v1985 = vshll.u32 2131351028, %v1976
  %v1986 = vshrl.u32 2102212464, %v1977
  %v1987 = vor.u32 %v1985, %v1986
  %v1988 = vshll.u32 2102212464, %v1976
  %v1989 = vshrl.u32 920167782, %v1977
  %v1990 = vor.u32 %v1988, %v1989
  %v1991 = vshll.u32 920167782, %v1976
  %v1992 = vshrl.u32 1326507024, %v1977
  %v1993 = vor.u32 %v1991, %v1992
  %vm1994 = vcmp.lt.s32.totalorder %v1975, 1
  %vm1995 = vcmp.lt.s32.totalorder %v1975, 2
  %vm1996 = vcmp.lt.s32.totalorder %v1975, 3
  %vm1997 = vcmp.lt.s32.totalorder %v1975, 4
  %v1998 = vsel %vm1994, %v1978, %v1981
  %v1999 = vsel %vm1997, %v1987, 2102212464
  %v2000 = vsel %vm1996, %v1984, %v1999
  %v2001 = vsel %vm1995, %v1998, %v2000
  %v2002 = vsel %vm1994, %v1981, %v1984
  %v2003 = vsel %vm1997, %v1990, 920167782
  %v2004 = vsel %vm1996, %v1987, %v2003
  %v2005 = vsel %vm1995, %v2002, %v2004
  %v2006 = vsel %vm1994, %v1984, %v1987
  %v2007 = vsel %vm1997, %v1993, 1326507024
  %v2008 = vsel %vm1996, %v1990, %v2007
  %v2009 = vsel %vm1995, %v2006, %v2008
  %v2010 = vshll.u32 %v1970, 8
  %v2011 = vmul.u32.u64.compose %v2010, %v2009
  %v2012 = vextract.low.u32 %v2011
  %v2013 = vextract.high.u32 %v2011
  %v2014 = vmul.u32.u64.compose %v2010, %v2005
  %v2015 = vextract.low.u32 %v2014
  %v2016 = vextract.high.u32 %v2014
  %v2017 = vmul.u32 %v2010, %v2001
  %v2018 = vadd.s32 %v2013, %v2015
  %vm2019 = vc.u32 %v2013, %v2015
  %v2020 = vadd.s32 %v2016, 1
  %v2021 = vsel %vm2019, %v2020, %v2016
  %v2022 = vadd.s32 %v2017, %v2021
  %v2023 = vadd.s32 %v2022, 536870912
  %v2024 = vshrl.u32 %v2023, 30
  %v2025 = vshll.u32 %v2024, 30
  %v2026 = vsub.s32 %v2022, %v2025
  %vm2027 = vcmp.lt.s32.totalorder %v2026, 0
  %v2028 = vsub.s32 0, %v2026
  %v2029 = vsel %vm2027, %v2028, %v2026
  %v2030 = vclz %v2029
  %v2031 = vsub.s32 %v2030, 2
  %vm2032 = vcmp.gt.s32.totalorder 0, %v2031
  %v2033 = vsel %vm2032, 0, %v2031
  %v2034 = vsub.s32 32, %v2033
  %v2035 = vshll.u32 %v2026, %v2033
  %v2036 = vshrl.u32 %v2018, %v2034
  %v2037 = vor.u32 %v2035, %v2036
  %v2038 = vsub.s32 4294967266, %v2033
  %v2039 = vadd.s32 %v2038, 127
  %v2040 = vshll.u32 %v2039, 23
  %v2041 = vor.u32 4788187, %v2040
  %v2042 = vand.u32 2147483647, %v2041
  %v2044 = vcvt.s32.f32 %v2037
  %v2045 = vmul.f32 %v2044, %v2042
  %v2046 = vxor.u32 %v2045, 2147483648
  %v2047 = vsel %vm1964, %v2046, %v2045
  %v2048 = vsub.s32 4, %v2024
  %v2049 = vsel %vm1964, %v2048, %v2024
  %v2050 = vsel %vm1963, %v813, %v2047
  %v2051 = vsel %vm1963, 0, %v2049
  %v2052 = vcosq.f32.pop %v2050
  %v2053 = vsinq.f32.pop %v2050
  %vm2054 = vweird.f32 %v813
  %v2055 = vand.u32 %v2051, 3
  %vm2056 = vcmp.lt.s32.totalorder %v2055, 2
  %vm2057 = vcmp.eq.s32.totalorder %v2055, 0
  %v2058 = vxor.u32 %v2053, 2147483648
  %v2059 = vsel %vm2057, %v2052, %v2058
  %vm2060 = vcmp.eq.s32.totalorder %v2055, 2
  %v2061 = vxor.u32 %v2052, 2147483648
  %v2062 = vsel %vm2060, %v2061, %v2053
  %v2063 = vsel %vm2056, %v2059, %v2062
  %v2064 = vsel %vm2054, nan, %v2063
  %v2065 = vand.u32 2147483647, %v814
  %vm2066 = vcmp.le.f32.partialorder %v2065, 0.7853982
  %vm2067 = vcmp.lt.s32.totalorder %v814, 0
  %v2068 = vand.u32 %v814, 2139095040
  %v2069 = vshrl.u32 %v2068, 23
  %v2070 = vsub.s32 %v2069, 127
  %v2071 = vand.u32 2147483647, %v814
  %v2072 = vand.u32 %v2071, 8388607
  %v2073 = vor.u32 %v2072, 8388608
  %v2074 = vsub.s32 0, %v2073
  %v2075 = vadd.s32 %v2070, 1
  %vm2076 = vcmp.gt.s32.totalorder %v2075, 0
  %v2077 = vsel %vm2076, %v2075, 0
  %v2078 = vshrl.u32 %v2077, 5
  %v2079 = vand.u32 %v2077, 31
  %v2080 = vsub.s32 32, %v2079
  %v2081 = vshrl.u32 683565275, %v2080
  %v2082 = vshll.u32 683565275, %v2079
  %v2083 = vshrl.u32 2475754826, %v2080
  %v2084 = vor.u32 %v2082, %v2083
  %v2085 = vshll.u32 2475754826, %v2079
  %v2086 = vshrl.u32 2131351028, %v2080
  %v2087 = vor.u32 %v2085, %v2086
  %v2088 = vshll.u32 2131351028, %v2079
  %v2089 = vshrl.u32 2102212464, %v2080
  %v2090 = vor.u32 %v2088, %v2089
  %v2091 = vshll.u32 2102212464, %v2079
  %v2092 = vshrl.u32 920167782, %v2080
  %v2093 = vor.u32 %v2091, %v2092
  %v2094 = vshll.u32 920167782, %v2079
  %v2095 = vshrl.u32 1326507024, %v2080
  %v2096 = vor.u32 %v2094, %v2095
  %vm2097 = vcmp.lt.s32.totalorder %v2078, 1
  %vm2098 = vcmp.lt.s32.totalorder %v2078, 2
  %vm2099 = vcmp.lt.s32.totalorder %v2078, 3
  %vm2100 = vcmp.lt.s32.totalorder %v2078, 4
  %v2101 = vsel %vm2097, %v2081, %v2084
  %v2102 = vsel %vm2100, %v2090, 2102212464
  %v2103 = vsel %vm2099, %v2087, %v2102
  %v2104 = vsel %vm2098, %v2101, %v2103
  %v2105 = vsel %vm2097, %v2084, %v2087
  %v2106 = vsel %vm2100, %v2093, 920167782
  %v2107 = vsel %vm2099, %v2090, %v2106
  %v2108 = vsel %vm2098, %v2105, %v2107
  %v2109 = vsel %vm2097, %v2087, %v2090
  %v2110 = vsel %vm2100, %v2096, 1326507024
  %v2111 = vsel %vm2099, %v2093, %v2110
  %v2112 = vsel %vm2098, %v2109, %v2111
  %v2113 = vshll.u32 %v2073, 8
  %v2114 = vmul.u32.u64.compose %v2113, %v2112
  %v2115 = vextract.low.u32 %v2114
  %v2116 = vextract.high.u32 %v2114
  %v2117 = vmul.u32.u64.compose %v2113, %v2108
  %v2118 = vextract.low.u32 %v2117
  %v2119 = vextract.high.u32 %v2117
  %v2120 = vmul.u32 %v2113, %v2104
  %v2121 = vadd.s32 %v2116, %v2118
  %vm2122 = vc.u32 %v2116, %v2118
  %v2123 = vadd.s32 %v2119, 1
  %v2124 = vsel %vm2122, %v2123, %v2119
  %v2125 = vadd.s32 %v2120, %v2124
  %v2126 = vadd.s32 %v2125, 536870912
  %v2127 = vshrl.u32 %v2126, 30
  %v2128 = vshll.u32 %v2127, 30
  %v2129 = vsub.s32 %v2125, %v2128
  %vm2130 = vcmp.lt.s32.totalorder %v2129, 0
  %v2131 = vsub.s32 0, %v2129
  %v2132 = vsel %vm2130, %v2131, %v2129
  %v2133 = vclz %v2132
  %v2134 = vsub.s32 %v2133, 2
  %vm2135 = vcmp.gt.s32.totalorder 0, %v2134
  %v2136 = vsel %vm2135, 0, %v2134
  %v2137 = vsub.s32 32, %v2136
  %v2138 = vshll.u32 %v2129, %v2136
  %v2139 = vshrl.u32 %v2121, %v2137
  %v2140 = vor.u32 %v2138, %v2139
  %v2141 = vsub.s32 4294967266, %v2136
  %v2142 = vadd.s32 %v2141, 127
  %v2143 = vshll.u32 %v2142, 23
  %v2144 = vor.u32 4788187, %v2143
  %v2145 = vand.u32 2147483647, %v2144
  %v2147 = vcvt.s32.f32 %v2140
  %v2148 = vmul.f32 %v2147, %v2145
  %v2149 = vxor.u32 %v2148, 2147483648
  %v2150 = vsel %vm2067, %v2149, %v2148
  %v2151 = vsub.s32 4, %v2127
  %v2152 = vsel %vm2067, %v2151, %v2127
  %v2153 = vsel %vm2066, %v814, %v2150
  %v2154 = vsel %vm2066, 0, %v2152
  %v2155 = vcosq.f32.pop %v2153
  %v2156 = vsinq.f32.pop %v2153
  %vm2157 = vweird.f32 %v814
  %v2158 = vand.u32 %v2154, 3
  %vm2159 = vcmp.lt.s32.totalorder %v2158, 2
  %vm2160 = vcmp.eq.s32.totalorder %v2158, 0
  %v2161 = vxor.u32 %v2156, 2147483648
  %v2162 = vsel %vm2160, %v2155, %v2161
  %vm2163 = vcmp.eq.s32.totalorder %v2158, 2
  %v2164 = vxor.u32 %v2155, 2147483648
  %v2165 = vsel %vm2163, %v2164, %v2156
  %v2166 = vsel %vm2159, %v2162, %v2165
  %v2167 = vsel %vm2157, nan, %v2166
  %v2168 = vand.u32 2147483647, %v815
  %vm2169 = vcmp.le.f32.partialorder %v2168, 0.7853982
  %vm2170 = vcmp.lt.s32.totalorder %v815, 0
  %v2171 = vand.u32 %v815, 2139095040
  %v2172 = vshrl.u32 %v2171, 23
  %v2173 = vsub.s32 %v2172, 127
  %v2174 = vand.u32 2147483647, %v815
  %v2175 = vand.u32 %v2174, 8388607
  %v2176 = vor.u32 %v2175, 8388608
  %v2177 = vsub.s32 0, %v2176
  %v2178 = vadd.s32 %v2173, 1
  %vm2179 = vcmp.gt.s32.totalorder %v2178, 0
  %v2180 = vsel %vm2179, %v2178, 0
  %v2181 = vshrl.u32 %v2180, 5
  %v2182 = vand.u32 %v2180, 31
  %v2183 = vsub.s32 32, %v2182
  %v2184 = vshrl.u32 683565275, %v2183
  %v2185 = vshll.u32 683565275, %v2182
  %v2186 = vshrl.u32 2475754826, %v2183
  %v2187 = vor.u32 %v2185, %v2186
  %v2188 = vshll.u32 2475754826, %v2182
  %v2189 = vshrl.u32 2131351028, %v2183
  %v2190 = vor.u32 %v2188, %v2189
  %v2191 = vshll.u32 2131351028, %v2182
  %v2192 = vshrl.u32 2102212464, %v2183
  %v2193 = vor.u32 %v2191, %v2192
  %v2194 = vshll.u32 2102212464, %v2182
  %v2195 = vshrl.u32 920167782, %v2183
  %v2196 = vor.u32 %v2194, %v2195
  %v2197 = vshll.u32 920167782, %v2182
  %v2198 = vshrl.u32 1326507024, %v2183
  %v2199 = vor.u32 %v2197, %v2198
  %vm2200 = vcmp.lt.s32.totalorder %v2181, 1
  %vm2201 = vcmp.lt.s32.totalorder %v2181, 2
  %vm2202 = vcmp.lt.s32.totalorder %v2181, 3
  %vm2203 = vcmp.lt.s32.totalorder %v2181, 4
  %v2204 = vsel %vm2200, %v2184, %v2187
  %v2205 = vsel %vm2203, %v2193, 2102212464
  %v2206 = vsel %vm2202, %v2190, %v2205
  %v2207 = vsel %vm2201, %v2204, %v2206
  %v2208 = vsel %vm2200, %v2187, %v2190
  %v2209 = vsel %vm2203, %v2196, 920167782
  %v2210 = vsel %vm2202, %v2193, %v2209
  %v2211 = vsel %vm2201, %v2208, %v2210
  %v2212 = vsel %vm2200, %v2190, %v2193
  %v2213 = vsel %vm2203, %v2199, 1326507024
  %v2214 = vsel %vm2202, %v2196, %v2213
  %v2215 = vsel %vm2201, %v2212, %v2214
  %v2216 = vshll.u32 %v2176, 8
  %v2217 = vmul.u32.u64.compose %v2216, %v2215
  %v2218 = vextract.low.u32 %v2217
  %v2219 = vextract.high.u32 %v2217
  %v2220 = vmul.u32.u64.compose %v2216, %v2211
  %v2221 = vextract.low.u32 %v2220
  %v2222 = vextract.high.u32 %v2220
  %v2223 = vmul.u32 %v2216, %v2207
  %v2224 = vadd.s32 %v2219, %v2221
  %vm2225 = vc.u32 %v2219, %v2221
  %v2226 = vadd.s32 %v2222, 1
  %v2227 = vsel %vm2225, %v2226, %v2222
  %v2228 = vadd.s32 %v2223, %v2227
  %v2229 = vadd.s32 %v2228, 536870912
  %v2230 = vshrl.u32 %v2229, 30
  %v2231 = vshll.u32 %v2230, 30
  %v2232 = vsub.s32 %v2228, %v2231
  %vm2233 = vcmp.lt.s32.totalorder %v2232, 0
  %v2234 = vsub.s32 0, %v2232
  %v2235 = vsel %vm2233, %v2234, %v2232
  %v2236 = vclz %v2235
  %v2237 = vsub.s32 %v2236, 2
  %vm2238 = vcmp.gt.s32.totalorder 0, %v2237
  %v2239 = vsel %vm2238, 0, %v2237
  %v2240 = vsub.s32 32, %v2239
  %v2241 = vshll.u32 %v2232, %v2239
  %v2242 = vshrl.u32 %v2224, %v2240
  %v2243 = vor.u32 %v2241, %v2242
  %v2244 = vsub.s32 4294967266, %v2239
  %v2245 = vadd.s32 %v2244, 127
  %v2246 = vshll.u32 %v2245, 23
  %v2247 = vor.u32 4788187, %v2246
  %v2248 = vand.u32 2147483647, %v2247
  %v2250 = vcvt.s32.f32 %v2243
  %v2251 = vmul.f32 %v2250, %v2248
  %v2252 = vxor.u32 %v2251, 2147483648
  %v2253 = vsel %vm2170, %v2252, %v2251
  %v2254 = vsub.s32 4, %v2230
  %v2255 = vsel %vm2170, %v2254, %v2230
  %v2256 = vsel %vm2169, %v815, %v2253
  %v2257 = vsel %vm2169, 0, %v2255
  %v2258 = vcosq.f32.pop %v2256
  %v2259 = vsinq.f32.pop %v2256
  %vm2260 = vweird.f32 %v815
  %v2261 = vand.u32 %v2257, 3
  %vm2262 = vcmp.lt.s32.totalorder %v2261, 2
  %vm2263 = vcmp.eq.s32.totalorder %v2261, 0
  %v2264 = vxor.u32 %v2259, 2147483648
  %v2265 = vsel %vm2263, %v2258, %v2264
  %vm2266 = vcmp.eq.s32.totalorder %v2261, 2
  %v2267 = vxor.u32 %v2258, 2147483648
  %v2268 = vsel %vm2266, %v2267, %v2259
  %v2269 = vsel %vm2262, %v2265, %v2268
  %v2270 = vsel %vm2260, nan, %v2269
  %v2271 = vand.u32 2147483647, %v816
  %vm2272 = vcmp.le.f32.partialorder %v2271, 0.7853982
  %vm2273 = vcmp.lt.s32.totalorder %v816, 0
  %v2274 = vand.u32 %v816, 2139095040
  %v2275 = vshrl.u32 %v2274, 23
  %v2276 = vsub.s32 %v2275, 127
  %v2277 = vand.u32 2147483647, %v816
  %v2278 = vand.u32 %v2277, 8388607
  %v2279 = vor.u32 %v2278, 8388608
  %v2280 = vsub.s32 0, %v2279
  %v2281 = vadd.s32 %v2276, 1
  %vm2282 = vcmp.gt.s32.totalorder %v2281, 0
  %v2283 = vsel %vm2282, %v2281, 0
  %v2284 = vshrl.u32 %v2283, 5
  %v2285 = vand.u32 %v2283, 31
  %v2286 = vsub.s32 32, %v2285
  %v2287 = vshrl.u32 683565275, %v2286
  %v2288 = vshll.u32 683565275, %v2285
  %v2289 = vshrl.u32 2475754826, %v2286
  %v2290 = vor.u32 %v2288, %v2289
  %v2291 = vshll.u32 2475754826, %v2285
  %v2292 = vshrl.u32 2131351028, %v2286
  %v2293 = vor.u32 %v2291, %v2292
  %v2294 = vshll.u32 2131351028, %v2285
  %v2295 = vshrl.u32 2102212464, %v2286
  %v2296 = vor.u32 %v2294, %v2295
  %v2297 = vshll.u32 2102212464, %v2285
  %v2298 = vshrl.u32 920167782, %v2286
  %v2299 = vor.u32 %v2297, %v2298
  %v2300 = vshll.u32 920167782, %v2285
  %v2301 = vshrl.u32 1326507024, %v2286
  %v2302 = vor.u32 %v2300, %v2301
  %vm2303 = vcmp.lt.s32.totalorder %v2284, 1
  %vm2304 = vcmp.lt.s32.totalorder %v2284, 2
  %vm2305 = vcmp.lt.s32.totalorder %v2284, 3
  %vm2306 = vcmp.lt.s32.totalorder %v2284, 4
  %v2307 = vsel %vm2303, %v2287, %v2290
  %v2308 = vsel %vm2306, %v2296, 2102212464
  %v2309 = vsel %vm2305, %v2293, %v2308
  %v2310 = vsel %vm2304, %v2307, %v2309
  %v2311 = vsel %vm2303, %v2290, %v2293
  %v2312 = vsel %vm2306, %v2299, 920167782
  %v2313 = vsel %vm2305, %v2296, %v2312
  %v2314 = vsel %vm2304, %v2311, %v2313
  %v2315 = vsel %vm2303, %v2293, %v2296
  %v2316 = vsel %vm2306, %v2302, 1326507024
  %v2317 = vsel %vm2305, %v2299, %v2316
  %v2318 = vsel %vm2304, %v2315, %v2317
  %v2319 = vshll.u32 %v2279, 8
  %v2320 = vmul.u32.u64.compose %v2319, %v2318
  %v2321 = vextract.low.u32 %v2320
  %v2322 = vextract.high.u32 %v2320
  %v2323 = vmul.u32.u64.compose %v2319, %v2314
  %v2324 = vextract.low.u32 %v2323
  %v2325 = vextract.high.u32 %v2323
  %v2326 = vmul.u32 %v2319, %v2310
  %v2327 = vadd.s32 %v2322, %v2324
  %vm2328 = vc.u32 %v2322, %v2324
  %v2329 = vadd.s32 %v2325, 1
  %v2330 = vsel %vm2328, %v2329, %v2325
  %v2331 = vadd.s32 %v2326, %v2330
  %v2332 = vadd.s32 %v2331, 536870912
  %v2333 = vshrl.u32 %v2332, 30
  %v2334 = vshll.u32 %v2333, 30
  %v2335 = vsub.s32 %v2331, %v2334
  %vm2336 = vcmp.lt.s32.totalorder %v2335, 0
  %v2337 = vsub.s32 0, %v2335
  %v2338 = vsel %vm2336, %v2337, %v2335
  %v2339 = vclz %v2338
  %v2340 = vsub.s32 %v2339, 2
  %vm2341 = vcmp.gt.s32.totalorder 0, %v2340
  %v2342 = vsel %vm2341, 0, %v2340
  %v2343 = vsub.s32 32, %v2342
  %v2344 = vshll.u32 %v2335, %v2342
  %v2345 = vshrl.u32 %v2327, %v2343
  %v2346 = vor.u32 %v2344, %v2345
  %v2347 = vsub.s32 4294967266, %v2342
  %v2348 = vadd.s32 %v2347, 127
  %v2349 = vshll.u32 %v2348, 23
  %v2350 = vor.u32 4788187, %v2349
  %v2351 = vand.u32 2147483647, %v2350
  %v2353 = vcvt.s32.f32 %v2346
  %v2354 = vmul.f32 %v2353, %v2351
  %v2355 = vxor.u32 %v2354, 2147483648
  %v2356 = vsel %vm2273, %v2355, %v2354
  %v2357 = vsub.s32 4, %v2333
  %v2358 = vsel %vm2273, %v2357, %v2333
  %v2359 = vsel %vm2272, %v816, %v2356
  %v2360 = vsel %vm2272, 0, %v2358
  %v2361 = vcosq.f32.pop %v2359
  %v2362 = vsinq.f32.pop %v2359
  %vm2363 = vweird.f32 %v816
  %v2364 = vand.u32 %v2360, 3
  %vm2365 = vcmp.lt.s32.totalorder %v2364, 2
  %vm2366 = vcmp.eq.s32.totalorder %v2364, 0
  %v2367 = vxor.u32 %v2362, 2147483648
  %v2368 = vsel %vm2366, %v2361, %v2367
  %vm2369 = vcmp.eq.s32.totalorder %v2364, 2
  %v2370 = vxor.u32 %v2361, 2147483648
  %v2371 = vsel %vm2369, %v2370, %v2362
  %v2372 = vsel %vm2365, %v2368, %v2371
  %v2373 = vsel %vm2363, nan, %v2372
  %v2374 = vand.u32 2147483647, %v817
  %vm2375 = vcmp.le.f32.partialorder %v2374, 0.7853982
  %vm2376 = vcmp.lt.s32.totalorder %v817, 0
  %v2377 = vand.u32 %v817, 2139095040
  %v2378 = vshrl.u32 %v2377, 23
  %v2379 = vsub.s32 %v2378, 127
  %v2380 = vand.u32 2147483647, %v817
  %v2381 = vand.u32 %v2380, 8388607
  %v2382 = vor.u32 %v2381, 8388608
  %v2383 = vsub.s32 0, %v2382
  %v2384 = vadd.s32 %v2379, 1
  %vm2385 = vcmp.gt.s32.totalorder %v2384, 0
  %v2386 = vsel %vm2385, %v2384, 0
  %v2387 = vshrl.u32 %v2386, 5
  %v2388 = vand.u32 %v2386, 31
  %v2389 = vsub.s32 32, %v2388
  %v2390 = vshrl.u32 683565275, %v2389
  %v2391 = vshll.u32 683565275, %v2388
  %v2392 = vshrl.u32 2475754826, %v2389
  %v2393 = vor.u32 %v2391, %v2392
  %v2394 = vshll.u32 2475754826, %v2388
  %v2395 = vshrl.u32 2131351028, %v2389
  %v2396 = vor.u32 %v2394, %v2395
  %v2397 = vshll.u32 2131351028, %v2388
  %v2398 = vshrl.u32 2102212464, %v2389
  %v2399 = vor.u32 %v2397, %v2398
  %v2400 = vshll.u32 2102212464, %v2388
  %v2401 = vshrl.u32 920167782, %v2389
  %v2402 = vor.u32 %v2400, %v2401
  %v2403 = vshll.u32 920167782, %v2388
  %v2404 = vshrl.u32 1326507024, %v2389
  %v2405 = vor.u32 %v2403, %v2404
  %vm2406 = vcmp.lt.s32.totalorder %v2387, 1
  %vm2407 = vcmp.lt.s32.totalorder %v2387, 2
  %vm2408 = vcmp.lt.s32.totalorder %v2387, 3
  %vm2409 = vcmp.lt.s32.totalorder %v2387, 4
  %v2410 = vsel %vm2406, %v2390, %v2393
  %v2411 = vsel %vm2409, %v2399, 2102212464
  %v2412 = vsel %vm2408, %v2396, %v2411
  %v2413 = vsel %vm2407, %v2410, %v2412
  %v2414 = vsel %vm2406, %v2393, %v2396
  %v2415 = vsel %vm2409, %v2402, 920167782
  %v2416 = vsel %vm2408, %v2399, %v2415
  %v2417 = vsel %vm2407, %v2414, %v2416
  %v2418 = vsel %vm2406, %v2396, %v2399
  %v2419 = vsel %vm2409, %v2405, 1326507024
  %v2420 = vsel %vm2408, %v2402, %v2419
  %v2421 = vsel %vm2407, %v2418, %v2420
  %v2422 = vshll.u32 %v2382, 8
  %v2423 = vmul.u32.u64.compose %v2422, %v2421
  %v2424 = vextract.low.u32 %v2423
  %v2425 = vextract.high.u32 %v2423
  %v2426 = vmul.u32.u64.compose %v2422, %v2417
  %v2427 = vextract.low.u32 %v2426
  %v2428 = vextract.high.u32 %v2426
  %v2429 = vmul.u32 %v2422, %v2413
  %v2430 = vadd.s32 %v2425, %v2427
  %vm2431 = vc.u32 %v2425, %v2427
  %v2432 = vadd.s32 %v2428, 1
  %v2433 = vsel %vm2431, %v2432, %v2428
  %v2434 = vadd.s32 %v2429, %v2433
  %v2435 = vadd.s32 %v2434, 536870912
  %v2436 = vshrl.u32 %v2435, 30
  %v2437 = vshll.u32 %v2436, 30
  %v2438 = vsub.s32 %v2434, %v2437
  %vm2439 = vcmp.lt.s32.totalorder %v2438, 0
  %v2440 = vsub.s32 0, %v2438
  %v2441 = vsel %vm2439, %v2440, %v2438
  %v2442 = vclz %v2441
  %v2443 = vsub.s32 %v2442, 2
  %vm2444 = vcmp.gt.s32.totalorder 0, %v2443
  %v2445 = vsel %vm2444, 0, %v2443
  %v2446 = vsub.s32 32, %v2445
  %v2447 = vshll.u32 %v2438, %v2445
  %v2448 = vshrl.u32 %v2430, %v2446
  %v2449 = vor.u32 %v2447, %v2448
  %v2450 = vsub.s32 4294967266, %v2445
  %v2451 = vadd.s32 %v2450, 127
  %v2452 = vshll.u32 %v2451, 23
  %v2453 = vor.u32 4788187, %v2452
  %v2454 = vand.u32 2147483647, %v2453
  %v2456 = vcvt.s32.f32 %v2449
  %v2457 = vmul.f32 %v2456, %v2454
  %v2458 = vxor.u32 %v2457, 2147483648
  %v2459 = vsel %vm2376, %v2458, %v2457
  %v2460 = vsub.s32 4, %v2436
  %v2461 = vsel %vm2376, %v2460, %v2436
  %v2462 = vsel %vm2375, %v817, %v2459
  %v2463 = vsel %vm2375, 0, %v2461
  %v2464 = vcosq.f32.pop %v2462
  %v2465 = vsinq.f32.pop %v2462
  %vm2466 = vweird.f32 %v817
  %v2467 = vand.u32 %v2463, 3
  %vm2468 = vcmp.lt.s32.totalorder %v2467, 2
  %vm2469 = vcmp.eq.s32.totalorder %v2467, 0
  %v2470 = vxor.u32 %v2465, 2147483648
  %v2471 = vsel %vm2469, %v2464, %v2470
  %vm2472 = vcmp.eq.s32.totalorder %v2467, 2
  %v2473 = vxor.u32 %v2464, 2147483648
  %v2474 = vsel %vm2472, %v2473, %v2465
  %v2475 = vsel %vm2468, %v2471, %v2474
  %v2476 = vsel %vm2466, nan, %v2475
  %v2477 = vand.u32 2147483647, %v818
  %vm2478 = vcmp.le.f32.partialorder %v2477, 0.7853982
  %vm2479 = vcmp.lt.s32.totalorder %v818, 0
  %v2480 = vand.u32 %v818, 2139095040
  %v2481 = vshrl.u32 %v2480, 23
  %v2482 = vsub.s32 %v2481, 127
  %v2483 = vand.u32 2147483647, %v818
  %v2484 = vand.u32 %v2483, 8388607
  %v2485 = vor.u32 %v2484, 8388608
  %v2486 = vsub.s32 0, %v2485
  %v2487 = vadd.s32 %v2482, 1
  %vm2488 = vcmp.gt.s32.totalorder %v2487, 0
  %v2489 = vsel %vm2488, %v2487, 0
  %v2490 = vshrl.u32 %v2489, 5
  %v2491 = vand.u32 %v2489, 31
  %v2492 = vsub.s32 32, %v2491
  %v2493 = vshrl.u32 683565275, %v2492
  %v2494 = vshll.u32 683565275, %v2491
  %v2495 = vshrl.u32 2475754826, %v2492
  %v2496 = vor.u32 %v2494, %v2495
  %v2497 = vshll.u32 2475754826, %v2491
  %v2498 = vshrl.u32 2131351028, %v2492
  %v2499 = vor.u32 %v2497, %v2498
  %v2500 = vshll.u32 2131351028, %v2491
  %v2501 = vshrl.u32 2102212464, %v2492
  %v2502 = vor.u32 %v2500, %v2501
  %v2503 = vshll.u32 2102212464, %v2491
  %v2504 = vshrl.u32 920167782, %v2492
  %v2505 = vor.u32 %v2503, %v2504
  %v2506 = vshll.u32 920167782, %v2491
  %v2507 = vshrl.u32 1326507024, %v2492
  %v2508 = vor.u32 %v2506, %v2507
  %vm2509 = vcmp.lt.s32.totalorder %v2490, 1
  %vm2510 = vcmp.lt.s32.totalorder %v2490, 2
  %vm2511 = vcmp.lt.s32.totalorder %v2490, 3
  %vm2512 = vcmp.lt.s32.totalorder %v2490, 4
  %v2513 = vsel %vm2509, %v2493, %v2496
  %v2514 = vsel %vm2512, %v2502, 2102212464
  %v2515 = vsel %vm2511, %v2499, %v2514
  %v2516 = vsel %vm2510, %v2513, %v2515
  %v2517 = vsel %vm2509, %v2496, %v2499
  %v2518 = vsel %vm2512, %v2505, 920167782
  %v2519 = vsel %vm2511, %v2502, %v2518
  %v2520 = vsel %vm2510, %v2517, %v2519
  %v2521 = vsel %vm2509, %v2499, %v2502
  %v2522 = vsel %vm2512, %v2508, 1326507024
  %v2523 = vsel %vm2511, %v2505, %v2522
  %v2524 = vsel %vm2510, %v2521, %v2523
  %v2525 = vshll.u32 %v2485, 8
  %v2526 = vmul.u32.u64.compose %v2525, %v2524
  %v2527 = vextract.low.u32 %v2526
  %v2528 = vextract.high.u32 %v2526
  %v2529 = vmul.u32.u64.compose %v2525, %v2520
  %v2530 = vextract.low.u32 %v2529
  %v2531 = vextract.high.u32 %v2529
  %v2532 = vmul.u32 %v2525, %v2516
  %v2533 = vadd.s32 %v2528, %v2530
  %vm2534 = vc.u32 %v2528, %v2530
  %v2535 = vadd.s32 %v2531, 1
  %v2536 = vsel %vm2534, %v2535, %v2531
  %v2537 = vadd.s32 %v2532, %v2536
  %v2538 = vadd.s32 %v2537, 536870912
  %v2539 = vshrl.u32 %v2538, 30
  %v2540 = vshll.u32 %v2539, 30
  %v2541 = vsub.s32 %v2537, %v2540
  %vm2542 = vcmp.lt.s32.totalorder %v2541, 0
  %v2543 = vsub.s32 0, %v2541
  %v2544 = vsel %vm2542, %v2543, %v2541
  %v2545 = vclz %v2544
  %v2546 = vsub.s32 %v2545, 2
  %vm2547 = vcmp.gt.s32.totalorder 0, %v2546
  %v2548 = vsel %vm2547, 0, %v2546
  %v2549 = vsub.s32 32, %v2548
  %v2550 = vshll.u32 %v2541, %v2548
  %v2551 = vshrl.u32 %v2533, %v2549
  %v2552 = vor.u32 %v2550, %v2551
  %v2553 = vsub.s32 4294967266, %v2548
  %v2554 = vadd.s32 %v2553, 127
  %v2555 = vshll.u32 %v2554, 23
  %v2556 = vor.u32 4788187, %v2555
  %v2557 = vand.u32 2147483647, %v2556
  %v2559 = vcvt.s32.f32 %v2552
  %v2560 = vmul.f32 %v2559, %v2557
  %v2561 = vxor.u32 %v2560, 2147483648
  %v2562 = vsel %vm2479, %v2561, %v2560
  %v2563 = vsub.s32 4, %v2539
  %v2564 = vsel %vm2479, %v2563, %v2539
  %v2565 = vsel %vm2478, %v818, %v2562
  %v2566 = vsel %vm2478, 0, %v2564
  %v2567 = vcosq.f32.pop %v2565
  %v2568 = vsinq.f32.pop %v2565
  %vm2569 = vweird.f32 %v818
  %v2570 = vand.u32 %v2566, 3
  %vm2571 = vcmp.lt.s32.totalorder %v2570, 2
  %vm2572 = vcmp.eq.s32.totalorder %v2570, 0
  %v2573 = vxor.u32 %v2568, 2147483648
  %v2574 = vsel %vm2572, %v2567, %v2573
  %vm2575 = vcmp.eq.s32.totalorder %v2570, 2
  %v2576 = vxor.u32 %v2567, 2147483648
  %v2577 = vsel %vm2575, %v2576, %v2568
  %v2578 = vsel %vm2571, %v2574, %v2577
  %v2579 = vsel %vm2569, nan, %v2578
  %v2580 = vand.u32 2147483647, %v819
  %vm2581 = vcmp.le.f32.partialorder %v2580, 0.7853982
  %vm2582 = vcmp.lt.s32.totalorder %v819, 0
  %v2583 = vand.u32 %v819, 2139095040
  %v2584 = vshrl.u32 %v2583, 23
  %v2585 = vsub.s32 %v2584, 127
  %v2586 = vand.u32 2147483647, %v819
  %v2587 = vand.u32 %v2586, 8388607
  %v2588 = vor.u32 %v2587, 8388608
  %v2589 = vsub.s32 0, %v2588
  %v2590 = vadd.s32 %v2585, 1
  %vm2591 = vcmp.gt.s32.totalorder %v2590, 0
  %v2592 = vsel %vm2591, %v2590, 0
  %v2593 = vshrl.u32 %v2592, 5
  %v2594 = vand.u32 %v2592, 31
  %v2595 = vsub.s32 32, %v2594
  %v2596 = vshrl.u32 683565275, %v2595
  %v2597 = vshll.u32 683565275, %v2594
  %v2598 = vshrl.u32 2475754826, %v2595
  %v2599 = vor.u32 %v2597, %v2598
  %v2600 = vshll.u32 2475754826, %v2594
  %v2601 = vshrl.u32 2131351028, %v2595
  %v2602 = vor.u32 %v2600, %v2601
  %v2603 = vshll.u32 2131351028, %v2594
  %v2604 = vshrl.u32 2102212464, %v2595
  %v2605 = vor.u32 %v2603, %v2604
  %v2606 = vshll.u32 2102212464, %v2594
  %v2607 = vshrl.u32 920167782, %v2595
  %v2608 = vor.u32 %v2606, %v2607
  %v2609 = vshll.u32 920167782, %v2594
  %v2610 = vshrl.u32 1326507024, %v2595
  %v2611 = vor.u32 %v2609, %v2610
  %vm2612 = vcmp.lt.s32.totalorder %v2593, 1
  %vm2613 = vcmp.lt.s32.totalorder %v2593, 2
  %vm2614 = vcmp.lt.s32.totalorder %v2593, 3
  %vm2615 = vcmp.lt.s32.totalorder %v2593, 4
  %v2616 = vsel %vm2612, %v2596, %v2599
  %v2617 = vsel %vm2615, %v2605, 2102212464
  %v2618 = vsel %vm2614, %v2602, %v2617
  %v2619 = vsel %vm2613, %v2616, %v2618
  %v2620 = vsel %vm2612, %v2599, %v2602
  %v2621 = vsel %vm2615, %v2608, 920167782
  %v2622 = vsel %vm2614, %v2605, %v2621
  %v2623 = vsel %vm2613, %v2620, %v2622
  %v2624 = vsel %vm2612, %v2602, %v2605
  %v2625 = vsel %vm2615, %v2611, 1326507024
  %v2626 = vsel %vm2614, %v2608, %v2625
  %v2627 = vsel %vm2613, %v2624, %v2626
  %v2628 = vshll.u32 %v2588, 8
  %v2629 = vmul.u32.u64.compose %v2628, %v2627
  %v2630 = vextract.low.u32 %v2629
  %v2631 = vextract.high.u32 %v2629
  %v2632 = vmul.u32.u64.compose %v2628, %v2623
  %v2633 = vextract.low.u32 %v2632
  %v2634 = vextract.high.u32 %v2632
  %v2635 = vmul.u32 %v2628, %v2619
  %v2636 = vadd.s32 %v2631, %v2633
  %vm2637 = vc.u32 %v2631, %v2633
  %v2638 = vadd.s32 %v2634, 1
  %v2639 = vsel %vm2637, %v2638, %v2634
  %v2640 = vadd.s32 %v2635, %v2639
  %v2641 = vadd.s32 %v2640, 536870912
  %v2642 = vshrl.u32 %v2641, 30
  %v2643 = vshll.u32 %v2642, 30
  %v2644 = vsub.s32 %v2640, %v2643
  %vm2645 = vcmp.lt.s32.totalorder %v2644, 0
  %v2646 = vsub.s32 0, %v2644
  %v2647 = vsel %vm2645, %v2646, %v2644
  %v2648 = vclz %v2647
  %v2649 = vsub.s32 %v2648, 2
  %vm2650 = vcmp.gt.s32.totalorder 0, %v2649
  %v2651 = vsel %vm2650, 0, %v2649
  %v2652 = vsub.s32 32, %v2651
  %v2653 = vshll.u32 %v2644, %v2651
  %v2654 = vshrl.u32 %v2636, %v2652
  %v2655 = vor.u32 %v2653, %v2654
  %v2656 = vsub.s32 4294967266, %v2651
  %v2657 = vadd.s32 %v2656, 127
  %v2658 = vshll.u32 %v2657, 23
  %v2659 = vor.u32 4788187, %v2658
  %v2660 = vand.u32 2147483647, %v2659
  %v2662 = vcvt.s32.f32 %v2655
  %v2663 = vmul.f32 %v2662, %v2660
  %v2664 = vxor.u32 %v2663, 2147483648
  %v2665 = vsel %vm2582, %v2664, %v2663
  %v2666 = vsub.s32 4, %v2642
  %v2667 = vsel %vm2582, %v2666, %v2642
  %v2668 = vsel %vm2581, %v819, %v2665
  %v2669 = vsel %vm2581, 0, %v2667
  %v2670 = vcosq.f32.pop %v2668
  %v2671 = vsinq.f32.pop %v2668
  %vm2672 = vweird.f32 %v819
  %v2673 = vand.u32 %v2669, 3
  %vm2674 = vcmp.lt.s32.totalorder %v2673, 2
  %vm2675 = vcmp.eq.s32.totalorder %v2673, 0
  %v2676 = vxor.u32 %v2671, 2147483648
  %v2677 = vsel %vm2675, %v2670, %v2676
  %vm2678 = vcmp.eq.s32.totalorder %v2673, 2
  %v2679 = vxor.u32 %v2670, 2147483648
  %v2680 = vsel %vm2678, %v2679, %v2671
  %v2681 = vsel %vm2674, %v2677, %v2680
  %v2682 = vsel %vm2672, nan, %v2681
  %2692 = vrot.lane.b32.xlu0 %v1858, 32
  %v2693 = vpop.permute.xlu0 %2692
  %2694 = vrot.lane.b32.xlu0 %v1961, 32
  %v2695 = vpop.permute.xlu0 %2694
  %2696 = vrot.lane.b32.xlu0 %v2064, 32
  %v2697 = vpop.permute.xlu0 %2696
  %2698 = vrot.lane.b32.xlu0 %v2167, 32
  %v2699 = vpop.permute.xlu0 %2698
  %2700 = vrot.lane.b32.xlu0 %v2270, 32
  %v2701 = vpop.permute.xlu0 %2700
  %2702 = vrot.lane.b32.xlu0 %v2373, 32
  %v2703 = vpop.permute.xlu0 %2702
  %2704 = vrot.lane.b32.xlu0 %v2476, 32
  %v2705 = vpop.permute.xlu0 %2704
  %2706 = vrot.lane.b32.xlu0 %v2579, 32
  %v2707 = vpop.permute.xlu0 %2706
  %2708 = vrot.lane.b32.xlu0 %v2682, 32
  %v2709 = vpop.permute.xlu0 %2708
  %v2719 = vsel %vm61, %v923, %v2693
  %v2720 = vsel %vm61, %v1027, %v2695
  %v2721 = vsel %vm61, %v1131, %v2697
  %v2722 = vsel %vm61, %v1235, %v2699
  %v2723 = vsel %vm61, %v1339, %v2701
  %v2724 = vsel %vm61, %v1443, %v2703
  %v2725 = vsel %vm61, %v1547, %v2705
  %v2726 = vsel %vm61, %v1651, %v2707
  %v2727 = vsel %vm61, %v1755, %v2709
  %2728 = vst.msk [vmem:[%s13] sm:$0xff] %vm199, %v2719
  %2729 = vst.msk [vmem:[%s13 + $0x8] sm:$0xff] %vm199, %v2720
  %2730 = vst.msk [vmem:[%s13 + $0x10] sm:$0xff] %vm199, %v2721
  %2731 = vst.msk [vmem:[%s13 + $0x18] sm:$0xff] %vm199, %v2722
  %2732 = vst.msk [vmem:[%s13 + $0x20] sm:$0xff] %vm199, %v2723
  %2733 = vst.msk [vmem:[%s13 + $0x28] sm:$0xff] %vm199, %v2724
  %2734 = vst.msk [vmem:[%s13 + $0x30] sm:$0xff] %vm199, %v2725
  %2735 = vst.msk [vmem:[%s13 + $0x38] sm:$0xff] %vm199, %v2726
  %2736 = vst.msk [vmem:[%s13 + $0x40] sm:$0xff] %vm199, %v2727
  // Predicated region
  $region46: #{tpu_custom_call.1} parent=0 // pred_check
    _
  $region47: #{tpu_custom_call.1} parent=0 // pred_check_branch
    %2738 = sbr.rel (0) target = $region49
  $region48: #{tpu_custom_call.1} parent=0 // pred_region
    _
  $region49: #{tpu_custom_call.1} parent=0 // pred_fallthru
    _
  // Predicated region
  $region50: #{tpu_custom_call.1} parent=0 // pred_check
    _
  $region51: #{tpu_custom_call.1} parent=0 // pred_check_branch
    %2740 = sbr.rel (0) target = $region53
  $region52: #{tpu_custom_call.1} parent=0 // pred_region
    _
  $region53: #{tpu_custom_call.1} parent=0 // pred_fallthru
    _
  // Predicated region
  $region54: #{tpu_custom_call.1} parent=0 // pred_check
    _
  $region55: #{tpu_custom_call.1} parent=0 // pred_check_branch
    %2742 = sbr.rel (0) target = $region57
  $region56: #{tpu_custom_call.1} parent=0 // pred_region
    _
  $region57: #{tpu_custom_call.1} parent=0 // pred_fallthru
    _
  // Predicated region
  $region58: #{tpu_custom_call.1} parent=0 // pred_check
    _
  $region59: #{tpu_custom_call.1} parent=0 // pred_check_branch
    %2744 = sbr.rel (0) target = $region61
  $region60: #{tpu_custom_call.1} parent=0 // pred_region
    _
  $region61: #{tpu_custom_call.1} parent=0 // pred_fallthru
    _
  // Predicated region
  $region62: #{tpu_custom_call.1} parent=0 // pred_check
    _
  $region63: #{tpu_custom_call.1} parent=0 // pred_check_branch
    %2746 = sbr.rel (0) target = $region65
  $region64: #{tpu_custom_call.1} parent=0 // pred_region
    _
  $region65: #{tpu_custom_call.1} parent=0 // pred_fallthru
    _
  // Predicated region
  $region66: #{tpu_custom_call.1} parent=0 // pred_check
    _
  $region67: #{tpu_custom_call.1} parent=0 // pred_check_branch
    %2748 = sbr.rel (0) target = $region69
  $region68: #{tpu_custom_call.1} parent=0 // pred_region
    _
  $region69: #{tpu_custom_call.1} parent=0 // pred_fallthru
    _

</llo_original>
